<compile_context>
chip_gen: v5e
topology: v5e:2x2
jax: 0.10.0
libtpu: 0.0.40
codegen_flags: <defaults>
</compile_context>

<pallas_src>
import jax
import jax.numpy as jnp
from jax.experimental import pallas as pl
from jax.experimental.pallas import tpu as pltpu

NUM_CLASSES = 2
VGGISH_OUT = 128            # canonical VGGish embedding size
CONV_OUT = NUM_CLASSES      # convnet_init replaces the classifier head -> num_classes
CONV_CH = 8                 # stand-in conv channels (both branches)

H = W = 16                  # spatial size of both inputs
WP = W + 2                  # padded width (conv padding = 1)
SPAT = H * WP               # 288 = lane width of the in-kernel conv output
PADDED_LEN = (H + 2) * WP   # 324 = length of the row-flattened padded input
FLAT = 384                  # lane-padded input length (>= 2*WP + 2 + SPAT = 326)
H2, W2 = H // 2, W // 2
VGG_FC_IN = CONV_CH * H2 * W2   # 512


# ------------------------------ Pallas kernel -------------------------------

def _kd_kernel(img_ref, aud_ref,
               wci_ref, bci_ref,          # image conv:  bf16 (8, 27),  f32 (8, 1)
               wca_ref, bca_ref,          # audio conv:  bf16 (8, 9),   f32 (8, 1)
               wcf_ref, bcf_ref,          # image fc:    f32 (8, 2),    f32 (1, 2)
               wvf_ref, bvf_ref,          # vggish fc:   bf16 (2304, 128), f32 (1, 128)
               whc_ref, wha_ref, bh_ref,  # head:        f32 (2, 2), (128, 2), (1, 2)
               o_ref):                    # out:         f32 (1, 1, 2)
    f32 = jnp.float32
    bf16 = jnp.bfloat16

    def conv3x3_relu(x, w_ref, b_ref):
        # x: (Cin, FLAT) zero-padded, row-flattened (padded width WP) input.
        # Fused im2col: the 9 taps are static lane slices; a single MXU matmul
        # produces the ReLU'd conv output laid out lane-dense as (CONV_CH, SPAT)
        # where lane q = y*WP + x (valid where q % WP < W).
        taps = [x[:, kh * WP + kw: kh * WP + kw + SPAT]
                for kh in range(3) for kw in range(3)]
        patches = jnp.concatenate(taps, axis=0).astype(bf16)       # (Cin*9, SPAT)
        acc = jnp.dot(w_ref[...], patches, preferred_element_type=f32)
        return jnp.maximum(acc + b_ref[...], 0.0)                  # f32 (8, SPAT)

    def shift_lanes(v, k):
        # result[:, q] = v[:, q + k]; wrapped values land only in unused lanes.
        return jnp.concatenate([v[:, k:], v[:, :k]], axis=1)

    # ---- image branch: conv3x3 + ReLU -> global avg pool -> fc ----
    h = conv3x3_relu(img_ref[0], wci_ref, bci_ref)                 # (8, SPAT)
    lane = jax.lax.broadcasted_iota(jnp.int32, (1, SPAT), 1)
    gap = jnp.where(lane % WP < W, 1.0 / (H * W), 0.0).astype(f32)  # (1, SPAT)
    # masked mean over the valid 16x16 lanes (contract lanes of both operands)
    c_feat = jax.lax.dot_general(gap, h, (((1,), (1,)), ((), ())),
                                 preferred_element_type=f32)        # (1, 8)
    c = jnp.dot(c_feat, wcf_ref[...], preferred_element_type=f32) + bcf_ref[...]

    # ---- audio branch: conv3x3 + ReLU -> 2x2 maxpool -> fc + ReLU ----
    g = conv3x3_relu(aud_ref[0], wca_ref, bca_ref)                 # (8, SPAT)
    g = jnp.maximum(g, shift_lanes(g, 1))                          # max over x pairs
    g = jnp.maximum(g, shift_lanes(g, WP))                         # max over y pairs
    # pooled value for (co, y2, x2) now sits at lane 2*y2*WP + 2*x2; the
    # pool -> channel-major flatten -> Linear is folded into wvf_ref (rows of
    # zeros at unused lanes), so the whole thing is one matmul.
    g_cat = jnp.concatenate([g[co:co + 1, :] for co in range(CONV_CH)],
                            axis=1)                                # (1, 8*SPAT)
    a = jnp.dot(g_cat.astype(bf16), wvf_ref[...], preferred_element_type=f32)
    a = jnp.maximum(a + bvf_ref[...], 0.0)                         # (1, 128)

    # ---- combined head: cat(c, a) @ W_head^T + b ----
    out = (jnp.dot(c, whc_ref[...], preferred_element_type=f32)
           + jnp.dot(a, wha_ref[...], preferred_element_type=f32)
           + bh_ref[...])
    o_ref[0] = out.astype(o_ref.dtype)


# ------------------------------ host-side glue ------------------------------

def _pad_flat(x):
    # (B, C, H, W) -> (B, C, FLAT): zero-pad H/W by 1 (conv padding), flatten
    # the padded rows, and pad the flat axis so every tap slice is in range.
    B, C = x.shape[:2]
    xp = jnp.pad(x, ((0, 0), (0, 0), (1, 1), (1, 1)))
    xf = xp.reshape(B, C, PADDED_LEN)
    return jnp.pad(xf, ((0, 0), (0, 0), (0, FLAT - PADDED_LEN)))


def init_params(key):
    ks = jax.random.split(key, 6)

    def w(k, shape, fan_in):
        return jax.random.normal(k, shape, jnp.float32) / jnp.sqrt(float(fan_in))

    p = {}
    # image branch: conv3x3(3->8) + relu -> global avg pool -> fc(8 -> num_classes)
    p["conv_w"] = w(ks[0], (CONV_CH, 3, 3, 3), 27)
    p["conv_b"] = jnp.zeros((CONV_CH,), jnp.float32)
    p["conv_fc_w"] = w(ks[1], (NUM_CLASSES, CONV_CH), CONV_CH)
    p["conv_fc_b"] = jnp.zeros((NUM_CLASSES,), jnp.float32)
    # vggish-like audio branch: conv3x3(1->8)+relu -> maxpool2 -> fc(512->128)+relu
    p["vgg_conv_w"] = w(ks[2], (CONV_CH, 1, 3, 3), 9)
    p["vgg_conv_b"] = jnp.zeros((CONV_CH,), jnp.float32)
    p["vgg_fc_w"] = w(ks[3], (VGGISH_OUT, VGG_FC_IN), VGG_FC_IN)
    p["vgg_fc_b"] = jnp.zeros((VGGISH_OUT,), jnp.float32)
    # self.combined = nn.Linear(vggish_output_size + conv_output_size, num_classes)
    p["head_w"] = w(ks[4], (NUM_CLASSES, CONV_OUT + VGGISH_OUT), CONV_OUT + VGGISH_OUT)
    p["head_b"] = jnp.zeros((NUM_CLASSES,), jnp.float32)
    return p


def pack_params(p):
    f32, bf16 = jnp.float32, jnp.bfloat16
    # Fold the 2x2-maxpool gather + channel-major flatten into the vggish FC
    # weight: row co*SPAT + q is non-zero only at pooled lanes q = 2*y2*WP + 2*x2.
    pos = jnp.arange(H2 * W2)
    q_idx = 2 * (pos // W2) * WP + 2 * (pos % W2)
    sel = jax.nn.one_hot(q_idx, SPAT, dtype=f32)                     # (64, SPAT)
    wv = p["vgg_fc_w"].reshape(VGGISH_OUT, CONV_CH, H2 * W2)         # [n, c, p]
    wv_flat = jnp.einsum("pq,ncp->cqn", sel, wv).reshape(CONV_CH * SPAT, VGGISH_OUT)
    return dict(
        w_conv_img=p["conv_w"].transpose(0, 2, 3, 1).reshape(CONV_CH, 27).astype(bf16),
        b_conv_img=p["conv_b"].reshape(CONV_CH, 1).astype(f32),
        w_conv_aud=p["vgg_conv_w"].transpose(0, 2, 3, 1).reshape(CONV_CH, 9).astype(bf16),
        b_conv_aud=p["vgg_conv_b"].reshape(CONV_CH, 1).astype(f32),
        w_conv_fc=p["conv_fc_w"].T.astype(f32),                      # (8, 2)
        b_conv_fc=p["conv_fc_b"].reshape(1, CONV_OUT).astype(f32),
        w_vgg_fc=wv_flat.astype(bf16),                               # (2304, 128)
        b_vgg_fc=p["vgg_fc_b"].reshape(1, VGGISH_OUT).astype(f32),
        w_head_c=p["head_w"][:, :CONV_OUT].T.astype(f32),            # (2, 2)
        w_head_a=p["head_w"][:, CONV_OUT:].T.astype(f32),            # (128, 2)
        b_head=p["head_b"].reshape(1, NUM_CLASSES).astype(f32),
    )


def _const_spec(shape):
    nd = len(shape)
    return pl.BlockSpec(shape, lambda b: (0,) * nd)   # resident across grid steps


def kissing_detector_forward(packed, audio, image):
    B = image.shape[0]
    assert image.shape == (B, 3, H, W) and audio.shape == (B, 1, H, W)
    img_flat = _pad_flat(image)                                      # (B, 3, FLAT)
    aud_flat = _pad_flat(audio)                                      # (B, 1, FLAT)

    out = pl.pallas_call(
        _kd_kernel,
        out_shape=jax.ShapeDtypeStruct((B, 1, NUM_CLASSES), jnp.float32),
        grid=(B,),
        in_specs=[
            pl.BlockSpec((1, 3, FLAT), lambda b: (b, 0, 0)),
            pl.BlockSpec((1, 1, FLAT), lambda b: (b, 0, 0)),
            _const_spec((CONV_CH, 27)), _const_spec((CONV_CH, 1)),
            _const_spec((CONV_CH, 9)), _const_spec((CONV_CH, 1)),
            _const_spec((CONV_CH, CONV_OUT)), _const_spec((1, CONV_OUT)),
            _const_spec((CONV_CH * SPAT, VGGISH_OUT)), _const_spec((1, VGGISH_OUT)),
            _const_spec((CONV_OUT, NUM_CLASSES)), _const_spec((VGGISH_OUT, NUM_CLASSES)),
            _const_spec((1, NUM_CLASSES)),
        ],
        out_specs=pl.BlockSpec((1, 1, NUM_CLASSES), lambda b: (b, 0, 0)),
        compiler_params=pltpu.CompilerParams(
            dimension_semantics=("parallel",)),
    )(img_flat, aud_flat,
      packed["w_conv_img"], packed["b_conv_img"],
      packed["w_conv_aud"], packed["b_conv_aud"],
      packed["w_conv_fc"], packed["b_conv_fc"],
      packed["w_vgg_fc"], packed["b_vgg_fc"],
      packed["w_head_c"], packed["w_head_a"], packed["b_head"])
    return out.reshape(B, NUM_CLASSES)


def reference_forward(params, audio, image):
    # Pure-JAX f32 reference of the same stand-in architecture.
    def conv_relu(x, w, b):
        y = jax.lax.conv_general_dilated(
            x, w, window_strides=(1, 1), padding=((1, 1), (1, 1)),
            dimension_numbers=("NCHW", "OIHW", "NCHW"))
        return jax.nn.relu(y + b.reshape(1, -1, 1, 1))

    h = conv_relu(image, params["conv_w"], params["conv_b"])
    c = jnp.mean(h, axis=(2, 3)) @ params["conv_fc_w"].T + params["conv_fc_b"]

    g = conv_relu(audio, params["vgg_conv_w"], params["vgg_conv_b"])
    B, C, hh, ww = g.shape
    g = g.reshape(B, C, hh // 2, 2, ww // 2, 2).max(axis=(3, 5)).reshape(B, -1)
    a = jax.nn.relu(g @ params["vgg_fc_w"].T + params["vgg_fc_b"])

    comb = jnp.concatenate([c, a], axis=1)
    return comb @ params["head_w"].T + params["head_b"]


if __name__ == "__main__":
    key = jax.random.PRNGKey(0)
    k_p, k_a, k_i = jax.random.split(key, 3)
    params = init_params(k_p)
    packed = pack_params(params)

    audio = jax.random.normal(k_a, (2, 1, H, W), jnp.float32)   # mel-spectrogram-like, NCHW
    image = jax.random.normal(k_i, (2, 3, H, W), jnp.float32)   # RGB frame, NCHW

    out = jax.jit(kissing_detector_forward)(packed, audio, image)
    jax.block_until_ready(out)

    ref = reference_forward(params, audio, image)
    assert out.shape == (2, NUM_CLASSES), out.shape
    assert bool(jnp.all(jnp.isfinite(out)))
    assert bool(jnp.allclose(out, ref, atol=0.15, rtol=0.15)), (out, ref)
    print("KERNEL_OK")
</pallas_src>

<mosaic_0001>
module attributes {stable_mosaic.version = 11 : i64} {
  func.func @_kd_kernel(%arg0: i32, %arg1: memref<1x3x384xf32, #tpu.memory_space<vmem>>, %arg2: memref<1x1x384xf32, #tpu.memory_space<vmem>>, %arg3: memref<8x27xbf16, #tpu.memory_space<vmem>>, %arg4: memref<8x1xf32, #tpu.memory_space<vmem>>, %arg5: memref<8x9xbf16, #tpu.memory_space<vmem>>, %arg6: memref<8x1xf32, #tpu.memory_space<vmem>>, %arg7: memref<8x2xf32, #tpu.memory_space<vmem>>, %arg8: memref<1x2xf32, #tpu.memory_space<vmem>>, %arg9: memref<2304x128xbf16, #tpu.memory_space<vmem>>, %arg10: memref<1x128xf32, #tpu.memory_space<vmem>>, %arg11: memref<2x2xf32, #tpu.memory_space<vmem>>, %arg12: memref<128x2xf32, #tpu.memory_space<vmem>>, %arg13: memref<1x2xf32, #tpu.memory_space<vmem>>, %arg14: memref<1x1x2xf32, #tpu.memory_space<vmem>>) attributes {dimension_semantics = [#tpu.dimension_semantics<parallel>], iteration_bounds = array<i64: 2>, scalar_prefetch = 0 : i64, scratch_operands = 0 : i64, tpu.core_type = #tpu.core_type<tc>, window_params = [{transform_indices = @transform_0, window_bounds = array<i64: 1, 3, 384>}, {transform_indices = @transform_1, window_bounds = array<i64: 1, 1, 384>}, {pipeline_mode = #tpu.pipeline_mode<synchronous>, transform_indices = @transform_2, window_bounds = array<i64: 8, 27>}, {pipeline_mode = #tpu.pipeline_mode<synchronous>, transform_indices = @transform_3, window_bounds = array<i64: 8, 1>}, {pipeline_mode = #tpu.pipeline_mode<synchronous>, transform_indices = @transform_4, window_bounds = array<i64: 8, 9>}, {pipeline_mode = #tpu.pipeline_mode<synchronous>, transform_indices = @transform_5, window_bounds = array<i64: 8, 1>}, {pipeline_mode = #tpu.pipeline_mode<synchronous>, transform_indices = @transform_6, window_bounds = array<i64: 8, 2>}, {pipeline_mode = #tpu.pipeline_mode<synchronous>, transform_indices = @transform_7, window_bounds = array<i64: 1, 2>}, {pipeline_mode = #tpu.pipeline_mode<synchronous>, transform_indices = @transform_8, window_bounds = array<i64: 2304, 128>}, {pipeline_mode = #tpu.pipeline_mode<synchronous>, transform_indices = @transform_9, window_bounds = array<i64: 1, 128>}, {pipeline_mode = #tpu.pipeline_mode<synchronous>, transform_indices = @transform_10, window_bounds = array<i64: 2, 2>}, {pipeline_mode = #tpu.pipeline_mode<synchronous>, transform_indices = @transform_11, window_bounds = array<i64: 128, 2>}, {pipeline_mode = #tpu.pipeline_mode<synchronous>, transform_indices = @transform_12, window_bounds = array<i64: 1, 2>}, {transform_indices = @transform_13, window_bounds = array<i64: 1, 1, 2>}]} {
    %c0 = arith.constant 0 : index
    %c0_0 = arith.constant 0 : index
    %c0_1 = arith.constant 0 : index
    %0 = vector.load %arg1[%c0, %c0_0, %c0_1] : memref<1x3x384xf32, #tpu.memory_space<vmem>>, vector<1x3x384xf32>
    %1 = vector.shape_cast %0 : vector<1x3x384xf32> to vector<3x384xf32>
    %2 = vector.extract_strided_slice %1 {offsets = [0, 0], sizes = [3, 288], strides = [1, 1]} : vector<3x384xf32> to vector<3x288xf32>
    %3 = vector.extract_strided_slice %1 {offsets = [0, 1], sizes = [3, 288], strides = [1, 1]} : vector<3x384xf32> to vector<3x288xf32>
    %4 = vector.extract_strided_slice %1 {offsets = [0, 2], sizes = [3, 288], strides = [1, 1]} : vector<3x384xf32> to vector<3x288xf32>
    %5 = vector.extract_strided_slice %1 {offsets = [0, 18], sizes = [3, 288], strides = [1, 1]} : vector<3x384xf32> to vector<3x288xf32>
    %6 = vector.extract_strided_slice %1 {offsets = [0, 19], sizes = [3, 288], strides = [1, 1]} : vector<3x384xf32> to vector<3x288xf32>
    %7 = vector.extract_strided_slice %1 {offsets = [0, 20], sizes = [3, 288], strides = [1, 1]} : vector<3x384xf32> to vector<3x288xf32>
    %8 = vector.extract_strided_slice %1 {offsets = [0, 36], sizes = [3, 288], strides = [1, 1]} : vector<3x384xf32> to vector<3x288xf32>
    %9 = vector.extract_strided_slice %1 {offsets = [0, 37], sizes = [3, 288], strides = [1, 1]} : vector<3x384xf32> to vector<3x288xf32>
    %10 = vector.extract_strided_slice %1 {offsets = [0, 38], sizes = [3, 288], strides = [1, 1]} : vector<3x384xf32> to vector<3x288xf32>
    %11 = tpu.concatenate %2, %3, %4, %5, %6, %7, %8, %9, %10 in 0 : vector<3x288xf32>, vector<3x288xf32>, vector<3x288xf32>, vector<3x288xf32>, vector<3x288xf32>, vector<3x288xf32>, vector<3x288xf32>, vector<3x288xf32>, vector<3x288xf32> -> vector<27x288xf32>
    %12 = arith.truncf %11 : vector<27x288xf32> to vector<27x288xbf16>
    %c0_2 = arith.constant 0 : index
    %c0_3 = arith.constant 0 : index
    %13 = vector.load %arg3[%c0_2, %c0_3] : memref<8x27xbf16, #tpu.memory_space<vmem>>, vector<8x27xbf16>
    %cst = arith.constant dense<0.000000e+00> : vector<8x288xf32>
    %14 = tpu.matmul %13, %12, %cst {dimension_numbers = #tpu.dot_dimension_numbers<[1], [0], [0], [1], [0, 0, 1, 1], [], []>} : vector<8x27xbf16>, vector<27x288xbf16>, vector<8x288xf32> -> vector<8x288xf32>
    %c0_4 = arith.constant 0 : index
    %c0_5 = arith.constant 0 : index
    %15 = vector.load %arg4[%c0_4, %c0_5] : memref<8x1xf32, #tpu.memory_space<vmem>>, vector<8x1xf32>
    %16 = vector.broadcast %15 : vector<8x1xf32> to vector<8x288xf32>
    %17 = arith.addf %14, %16 : vector<8x288xf32>
    %cst_6 = arith.constant 0.000000e+00 : f32
    %18 = vector.broadcast %cst_6 : f32 to vector<8x288xf32>
    %19 = arith.maximumf %17, %18 : vector<8x288xf32>
    %20 = tpu.iota {dimensions = array<i32: 1>} : vector<1x288xi32>
    %c18_i32 = arith.constant 18 : i32
    %c0_i32 = arith.constant 0 : i32
    %21 = arith.cmpi eq, %c18_i32, %c0_i32 : i32
    %c1_i32 = arith.constant 1 : i32
    %22 = arith.select %21, %c1_i32, %c18_i32 : i32
    %23 = vector.broadcast %22 : i32 to vector<1x288xi32>
    %24 = arith.remsi %20, %23 : vector<1x288xi32>
    %c0_i32_7 = arith.constant 0 : i32
    %25 = vector.broadcast %c0_i32_7 : i32 to vector<1x288xi32>
    %26 = arith.cmpi ne, %24, %25 : vector<1x288xi32>
    %c0_i32_8 = arith.constant 0 : i32
    %27 = vector.broadcast %c0_i32_8 : i32 to vector<1x288xi32>
    %28 = arith.cmpi slt, %24, %27 : vector<1x288xi32>
    %c0_i32_9 = arith.constant 0 : i32
    %29 = arith.cmpi slt, %22, %c0_i32_9 : i32
    %30 = vector.broadcast %29 : i1 to vector<1x288xi1>
    %31 = vector.broadcast %30 : vector<1x288xi1> to vector<1x288xi1>
    %32 = arith.xori %28, %31 : vector<1x288xi1>
    %33 = arith.andi %32, %26 : vector<1x288xi1>
    %34 = vector.broadcast %22 : i32 to vector<1x288xi32>
    %35 = arith.addi %24, %34 : vector<1x288xi32>
    %36 = arith.select %33, %35, %24 : vector<1x288xi1>, vector<1x288xi32>
    %c16_i32 = arith.constant 16 : i32
    %37 = vector.broadcast %c16_i32 : i32 to vector<1x288xi32>
    %38 = arith.cmpi slt, %36, %37 : vector<1x288xi32>
    %cst_10 = arith.constant 3.906250e-03 : f32
    %cst_11 = arith.constant 0.000000e+00 : f32
    %39 = vector.broadcast %cst_10 : f32 to vector<1x288xf32>
    %40 = vector.broadcast %cst_11 : f32 to vector<1x288xf32>
    %41 = arith.select %38, %39, %40 : vector<1x288xi1>, vector<1x288xf32>
    %cst_12 = arith.constant dense<0.000000e+00> : vector<1x8xf32>
    %42 = tpu.matmul %41, %19, %cst_12 {dimension_numbers = #tpu.dot_dimension_numbers<[1], [1], [0], [0], [0, 0, 1, 0], [], []>} : vector<1x288xf32>, vector<8x288xf32>, vector<1x8xf32> -> vector<1x8xf32>
    %c0_13 = arith.constant 0 : index
    %c0_14 = arith.constant 0 : index
    %43 = vector.load %arg7[%c0_13, %c0_14] : memref<8x2xf32, #tpu.memory_space<vmem>>, vector<8x2xf32>
    %cst_15 = arith.constant dense<0.000000e+00> : vector<1x2xf32>
    %44 = tpu.matmul %42, %43, %cst_15 {dimension_numbers = #tpu.dot_dimension_numbers<[1], [0], [0], [1], [0, 0, 1, 1], [], []>} : vector<1x8xf32>, vector<8x2xf32>, vector<1x2xf32> -> vector<1x2xf32>
    %c0_16 = arith.constant 0 : index
    %c0_17 = arith.constant 0 : index
    %45 = vector.load %arg8[%c0_16, %c0_17] : memref<1x2xf32, #tpu.memory_space<vmem>>, vector<1x2xf32>
    %46 = arith.addf %44, %45 : vector<1x2xf32>
    %c0_18 = arith.constant 0 : index
    %c0_19 = arith.constant 0 : index
    %c0_20 = arith.constant 0 : index
    %47 = vector.load %arg2[%c0_18, %c0_19, %c0_20] : memref<1x1x384xf32, #tpu.memory_space<vmem>>, vector<1x1x384xf32>
    %48 = vector.shape_cast %47 : vector<1x1x384xf32> to vector<1x384xf32>
    %49 = vector.extract_strided_slice %48 {offsets = [0, 0], sizes = [1, 288], strides = [1, 1]} : vector<1x384xf32> to vector<1x288xf32>
    %50 = vector.extract_strided_slice %48 {offsets = [0, 1], sizes = [1, 288], strides = [1, 1]} : vector<1x384xf32> to vector<1x288xf32>
    %51 = vector.extract_strided_slice %48 {offsets = [0, 2], sizes = [1, 288], strides = [1, 1]} : vector<1x384xf32> to vector<1x288xf32>
    %52 = vector.extract_strided_slice %48 {offsets = [0, 18], sizes = [1, 288], strides = [1, 1]} : vector<1x384xf32> to vector<1x288xf32>
    %53 = vector.extract_strided_slice %48 {offsets = [0, 19], sizes = [1, 288], strides = [1, 1]} : vector<1x384xf32> to vector<1x288xf32>
    %54 = vector.extract_strided_slice %48 {offsets = [0, 20], sizes = [1, 288], strides = [1, 1]} : vector<1x384xf32> to vector<1x288xf32>
    %55 = vector.extract_strided_slice %48 {offsets = [0, 36], sizes = [1, 288], strides = [1, 1]} : vector<1x384xf32> to vector<1x288xf32>
    %56 = vector.extract_strided_slice %48 {offsets = [0, 37], sizes = [1, 288], strides = [1, 1]} : vector<1x384xf32> to vector<1x288xf32>
    %57 = vector.extract_strided_slice %48 {offsets = [0, 38], sizes = [1, 288], strides = [1, 1]} : vector<1x384xf32> to vector<1x288xf32>
    %58 = tpu.concatenate %49, %50, %51, %52, %53, %54, %55, %56, %57 in 0 : vector<1x288xf32>, vector<1x288xf32>, vector<1x288xf32>, vector<1x288xf32>, vector<1x288xf32>, vector<1x288xf32>, vector<1x288xf32>, vector<1x288xf32>, vector<1x288xf32> -> vector<9x288xf32>
    %59 = arith.truncf %58 : vector<9x288xf32> to vector<9x288xbf16>
    %c0_21 = arith.constant 0 : index
    %c0_22 = arith.constant 0 : index
    %60 = vector.load %arg5[%c0_21, %c0_22] : memref<8x9xbf16, #tpu.memory_space<vmem>>, vector<8x9xbf16>
    %cst_23 = arith.constant dense<0.000000e+00> : vector<8x288xf32>
    %61 = tpu.matmul %60, %59, %cst_23 {dimension_numbers = #tpu.dot_dimension_numbers<[1], [0], [0], [1], [0, 0, 1, 1], [], []>} : vector<8x9xbf16>, vector<9x288xbf16>, vector<8x288xf32> -> vector<8x288xf32>
    %c0_24 = arith.constant 0 : index
    %c0_25 = arith.constant 0 : index
    %62 = vector.load %arg6[%c0_24, %c0_25] : memref<8x1xf32, #tpu.memory_space<vmem>>, vector<8x1xf32>
    %63 = vector.broadcast %62 : vector<8x1xf32> to vector<8x288xf32>
    %64 = arith.addf %61, %63 : vector<8x288xf32>
    %cst_26 = arith.constant 0.000000e+00 : f32
    %65 = vector.broadcast %cst_26 : f32 to vector<8x288xf32>
    %66 = arith.maximumf %64, %65 : vector<8x288xf32>
    %67 = vector.extract_strided_slice %66 {offsets = [0, 1], sizes = [8, 287], strides = [1, 1]} : vector<8x288xf32> to vector<8x287xf32>
    %68 = vector.extract_strided_slice %66 {offsets = [0, 0], sizes = [8, 1], strides = [1, 1]} : vector<8x288xf32> to vector<8x1xf32>
    %69 = tpu.concatenate %67, %68 in 1 : vector<8x287xf32>, vector<8x1xf32> -> vector<8x288xf32>
    %70 = arith.maximumf %66, %69 : vector<8x288xf32>
    %71 = vector.extract_strided_slice %70 {offsets = [0, 18], sizes = [8, 270], strides = [1, 1]} : vector<8x288xf32> to vector<8x270xf32>
    %72 = vector.extract_strided_slice %70 {offsets = [0, 0], sizes = [8, 18], strides = [1, 1]} : vector<8x288xf32> to vector<8x18xf32>
    %73 = tpu.concatenate %71, %72 in 1 : vector<8x270xf32>, vector<8x18xf32> -> vector<8x288xf32>
    %74 = arith.maximumf %70, %73 : vector<8x288xf32>
    %75 = vector.extract_strided_slice %74 {offsets = [0, 0], sizes = [1, 288], strides = [1, 1]} : vector<8x288xf32> to vector<1x288xf32>
    %76 = vector.extract_strided_slice %74 {offsets = [1, 0], sizes = [1, 288], strides = [1, 1]} : vector<8x288xf32> to vector<1x288xf32>
    %77 = vector.extract_strided_slice %74 {offsets = [2, 0], sizes = [1, 288], strides = [1, 1]} : vector<8x288xf32> to vector<1x288xf32>
    %78 = vector.extract_strided_slice %74 {offsets = [3, 0], sizes = [1, 288], strides = [1, 1]} : vector<8x288xf32> to vector<1x288xf32>
    %79 = vector.extract_strided_slice %74 {offsets = [4, 0], sizes = [1, 288], strides = [1, 1]} : vector<8x288xf32> to vector<1x288xf32>
    %80 = vector.extract_strided_slice %74 {offsets = [5, 0], sizes = [1, 288], strides = [1, 1]} : vector<8x288xf32> to vector<1x288xf32>
    %81 = vector.extract_strided_slice %74 {offsets = [6, 0], sizes = [1, 288], strides = [1, 1]} : vector<8x288xf32> to vector<1x288xf32>
    %82 = vector.extract_strided_slice %74 {offsets = [7, 0], sizes = [1, 288], strides = [1, 1]} : vector<8x288xf32> to vector<1x288xf32>
    %83 = tpu.concatenate %75, %76, %77, %78, %79, %80, %81, %82 in 1 : vector<1x288xf32>, vector<1x288xf32>, vector<1x288xf32>, vector<1x288xf32>, vector<1x288xf32>, vector<1x288xf32>, vector<1x288xf32>, vector<1x288xf32> -> vector<1x2304xf32>
    %84 = arith.truncf %83 : vector<1x2304xf32> to vector<1x2304xbf16>
    %c0_27 = arith.constant 0 : index
    %c0_28 = arith.constant 0 : index
    %85 = vector.load %arg9[%c0_27, %c0_28] : memref<2304x128xbf16, #tpu.memory_space<vmem>>, vector<2304x128xbf16>
    %cst_29 = arith.constant dense<0.000000e+00> : vector<1x128xf32>
    %86 = tpu.matmul %84, %85, %cst_29 {dimension_numbers = #tpu.dot_dimension_numbers<[1], [0], [0], [1], [0, 0, 1, 1], [], []>} : vector<1x2304xbf16>, vector<2304x128xbf16>, vector<1x128xf32> -> vector<1x128xf32>
    %c0_30 = arith.constant 0 : index
    %c0_31 = arith.constant 0 : index
    %87 = vector.load %arg10[%c0_30, %c0_31] : memref<1x128xf32, #tpu.memory_space<vmem>>, vector<1x128xf32>
    %88 = arith.addf %86, %87 : vector<1x128xf32>
    %cst_32 = arith.constant 0.000000e+00 : f32
    %89 = vector.broadcast %cst_32 : f32 to vector<1x128xf32>
    %90 = arith.maximumf %88, %89 : vector<1x128xf32>
    %c0_33 = arith.constant 0 : index
    %c0_34 = arith.constant 0 : index
    %91 = vector.load %arg11[%c0_33, %c0_34] : memref<2x2xf32, #tpu.memory_space<vmem>>, vector<2x2xf32>
    %cst_35 = arith.constant dense<0.000000e+00> : vector<1x2xf32>
    %92 = tpu.matmul %46, %91, %cst_35 {dimension_numbers = #tpu.dot_dimension_numbers<[1], [0], [0], [1], [0, 0, 1, 1], [], []>} : vector<1x2xf32>, vector<2x2xf32>, vector<1x2xf32> -> vector<1x2xf32>
    %c0_36 = arith.constant 0 : index
    %c0_37 = arith.constant 0 : index
    %93 = vector.load %arg12[%c0_36, %c0_37] : memref<128x2xf32, #tpu.memory_space<vmem>>, vector<128x2xf32>
    %cst_38 = arith.constant dense<0.000000e+00> : vector<1x2xf32>
    %94 = tpu.matmul %90, %93, %cst_38 {dimension_numbers = #tpu.dot_dimension_numbers<[1], [0], [0], [1], [0, 0, 1, 1], [], []>} : vector<1x128xf32>, vector<128x2xf32>, vector<1x2xf32> -> vector<1x2xf32>
    %95 = arith.addf %92, %94 : vector<1x2xf32>
    %c0_39 = arith.constant 0 : index
    %c0_40 = arith.constant 0 : index
    %96 = vector.load %arg13[%c0_39, %c0_40] : memref<1x2xf32, #tpu.memory_space<vmem>>, vector<1x2xf32>
    %97 = arith.addf %95, %96 : vector<1x2xf32>
    %c0_41 = arith.constant 0 : index
    %c0_42 = arith.constant 0 : index
    %c0_43 = arith.constant 0 : index
    %98 = vector.load %arg14[%c0_41, %c0_42, %c0_43] : memref<1x1x2xf32, #tpu.memory_space<vmem>>, vector<1x1x2xf32>
    %99 = vector.shape_cast %98 : vector<1x1x2xf32> to vector<1x2xf32>
    %100 = vector.shape_cast %97 : vector<1x2xf32> to vector<1x1x2xf32>
    tpu.vector_store %arg14[%c0_41, %c0_42, %c0_43], %100 {strides = array<i32>} : memref<1x1x2xf32, #tpu.memory_space<vmem>>, vector<1x1x2xf32>,
    return
  }
  func.func @transform_0(%arg0: i32) -> (i32, i32, i32) {
    %c0_i32 = arith.constant 0 : i32
    %c0_i32_0 = arith.constant 0 : i32
    %c0_i32_1 = arith.constant 0 : i32
    return %arg0, %c0_i32, %c0_i32_0 : i32, i32, i32
  }
  func.func @transform_1(%arg0: i32) -> (i32, i32, i32) {
    %c0_i32 = arith.constant 0 : i32
    %c0_i32_0 = arith.constant 0 : i32
    %c0_i32_1 = arith.constant 0 : i32
    return %arg0, %c0_i32, %c0_i32_0 : i32, i32, i32
  }
  func.func @transform_2(%arg0: i32) -> (i32, i32) {
    %c0_i32 = arith.constant 0 : i32
    %c0_i32_0 = arith.constant 0 : i32
    %c0_i32_1 = arith.constant 0 : i32
    return %c0_i32, %c0_i32_0 : i32, i32
  }
  func.func @transform_3(%arg0: i32) -> (i32, i32) {
    %c0_i32 = arith.constant 0 : i32
    %c0_i32_0 = arith.constant 0 : i32
    %c0_i32_1 = arith.constant 0 : i32
    return %c0_i32, %c0_i32_0 : i32, i32
  }
  func.func @transform_4(%arg0: i32) -> (i32, i32) {
    %c0_i32 = arith.constant 0 : i32
    %c0_i32_0 = arith.constant 0 : i32
    %c0_i32_1 = arith.constant 0 : i32
    return %c0_i32, %c0_i32_0 : i32, i32
  }
  func.func @transform_5(%arg0: i32) -> (i32, i32) {
    %c0_i32 = arith.constant 0 : i32
    %c0_i32_0 = arith.constant 0 : i32
    %c0_i32_1 = arith.constant 0 : i32
    return %c0_i32, %c0_i32_0 : i32, i32
  }
  func.func @transform_6(%arg0: i32) -> (i32, i32) {
    %c0_i32 = arith.constant 0 : i32
    %c0_i32_0 = arith.constant 0 : i32
    %c0_i32_1 = arith.constant 0 : i32
    return %c0_i32, %c0_i32_0 : i32, i32
  }
  func.func @transform_7(%arg0: i32) -> (i32, i32) {
    %c0_i32 = arith.constant 0 : i32
    %c0_i32_0 = arith.constant 0 : i32
    %c0_i32_1 = arith.constant 0 : i32
    return %c0_i32, %c0_i32_0 : i32, i32
  }
  func.func @transform_8(%arg0: i32) -> (i32, i32) {
    %c0_i32 = arith.constant 0 : i32
    %c0_i32_0 = arith.constant 0 : i32
    %c0_i32_1 = arith.constant 0 : i32
    return %c0_i32, %c0_i32_0 : i32, i32
  }
  func.func @transform_9(%arg0: i32) -> (i32, i32) {
    %c0_i32 = arith.constant 0 : i32
    %c0_i32_0 = arith.constant 0 : i32
    %c0_i32_1 = arith.constant 0 : i32
    return %c0_i32, %c0_i32_0 : i32, i32
  }
  func.func @transform_10(%arg0: i32) -> (i32, i32) {
    %c0_i32 = arith.constant 0 : i32
    %c0_i32_0 = arith.constant 0 : i32
    %c0_i32_1 = arith.constant 0 : i32
    return %c0_i32, %c0_i32_0 : i32, i32
  }
  func.func @transform_11(%arg0: i32) -> (i32, i32) {
    %c0_i32 = arith.constant 0 : i32
    %c0_i32_0 = arith.constant 0 : i32
    %c0_i32_1 = arith.constant 0 : i32
    return %c0_i32, %c0_i32_0 : i32, i32
  }
  func.func @transform_12(%arg0: i32) -> (i32, i32) {
    %c0_i32 = arith.constant 0 : i32
    %c0_i32_0 = arith.constant 0 : i32
    %c0_i32_1 = arith.constant 0 : i32
    return %c0_i32, %c0_i32_0 : i32, i32
  }
  func.func @transform_13(%arg0: i32) -> (i32, i32, i32) {
    %c0_i32 = arith.constant 0 : i32
    %c0_i32_0 = arith.constant 0 : i32
    %c0_i32_1 = arith.constant 0 : i32
    return %arg0, %c0_i32, %c0_i32_0 : i32, i32, i32
  }
}

</mosaic_0001>

<llo_original>
// kernel: kissing_detector_forward.1
$region0: #{kissing_detector_forward.1}
  #allocation0 [shape = 'u32[]', space=smem, size = 0x4, offset = 0x4, fixed_abs, tag = 'smem constant byte address 0x4 - core index']
  #allocation1 [shape = 'u32[72,128]{1,0:T(1,128)}', space=vmem, size = 0x9000, scoped, tag = 'internal scratch']
  %s0 = inlined_call_operand.vmem [shape: f32[2,3,384], index: 0, kind: input, shape index: {}]
  %s1 = inlined_call_operand.vmem [shape: f32[2,1,384], index: 1, kind: input, shape index: {}]
  %s2 = inlined_call_operand.vmem [shape: bf16[8,27], index: 2, kind: input, shape index: {}]
  %s3 = inlined_call_operand.vmem [shape: f32[8,1], index: 3, kind: input, shape index: {}]
  %s4 = inlined_call_operand.vmem [shape: bf16[8,9], index: 4, kind: input, shape index: {}]
  %s5 = inlined_call_operand.vmem [shape: f32[8,1], index: 5, kind: input, shape index: {}]
  %s6 = inlined_call_operand.vmem [shape: f32[8,2], index: 6, kind: input, shape index: {}]
  %s7 = inlined_call_operand.vmem [shape: f32[1,2], index: 7, kind: input, shape index: {}]
  %s8 = inlined_call_operand.hbm [shape: bf16[2304,128], index: 8, kind: input, shape index: {}]
  %s9 = inlined_call_operand.vmem [shape: f32[1,128], index: 9, kind: input, shape index: {}]
  %s10 = inlined_call_operand.vmem [shape: f32[2,2], index: 10, kind: input, shape index: {}]
  %s11 = inlined_call_operand.vmem [shape: f32[128,2], index: 11, kind: input, shape index: {}]
  %s12 = inlined_call_operand.vmem [shape: f32[1,2], index: 12, kind: input, shape index: {}]
  %s13 = inlined_call_operand.hbm [shape: f32[2,1,2], index: 13, kind: output, shape index: {}]
  %s14 = sld [smem:[#allocation0]]
  $region89: #{kissing_detector_forward.1} parent=0
    _
  %s16 = ssub.s32 1, %s14
  %s17 = scalar_select 0, %s16, %s14
  $region1: #{kissing_detector_forward.1} parent=0
    #allocation2 [shape = 'u8[589824]{0}', space=vmem, size = 0x90000, scoped, tag = 'input window, operand 8, single buffered']
    #allocation3 [shape = 's32[2]{0}', space=sflag, size = 0x8, scoped, tag = 'scoped memory for kissing_detector_forward.1']
    #allocation4 [shape = 's32[2]{0}', space=sflag, size = 0x8, scoped, tag = 'scoped memory for kissing_detector_forward.1']
    #allocation5 [shape = 'u8[1024]{0}', space=vmem, size = 0x400, scoped, tag = 'output window, operand 0']
    %18 = vsyncpa [#allocation3], 0
    %19 = vsyncpa [#allocation4], 0
    %s20 = scalar_lea.sflag [#allocation4], 1
    %21 = vsyncpa %s20, 0
    loop: start=0, step=1, limit=4
    $region2: #{kissing_detector_forward.1} parent=1 // loop_pre_header
      _
    $region3: #{kissing_detector_forward.1} parent=1 // loop_header
      %s23 = sphi 0, %s27
      %p24 = scmp.ge.s32.totalorder %s23, 4
      %s33 = sphi 0, %s35
      %s36 = sphi 0, %s33
      %s37 = sphi 0, %s36
      %s53 = sphi 0, %s37
      %s59 = sphi 0, %s61
      %s62 = sphi 0, %s59
      %s63 = sphi 0, %s62
      %s79 = sphi 0, %s63
      %s83 = sphi 0, %s83
      %s85 = sphi 0, %s83
      %s86 = sphi 0, %s85
      %s100 = sphi 0, %s86
      %s104 = sphi 0, %s104
      %s106 = sphi 0, %s104
      %s107 = sphi 0, %s106
      %s121 = sphi 0, %s107
      %s125 = sphi 0, %s125
      %s127 = sphi 0, %s125
      %s128 = sphi 0, %s127
      %s142 = sphi 0, %s128
      %s146 = sphi 0, %s146
      %s148 = sphi 0, %s146
      %s149 = sphi 0, %s148
      %s163 = sphi 0, %s149
      %s167 = sphi 0, %s167
      %s169 = sphi 0, %s167
      %s170 = sphi 0, %s169
      %s184 = sphi 0, %s170
      %s188 = sphi 0, %s188
      %s190 = sphi 0, %s188
      %s191 = sphi 0, %s190
      %s205 = sphi 0, %s191
      %s209 = sphi 0, %s209
      %s211 = sphi 0, %s209
      %s212 = sphi 0, %s211
      %s226 = sphi 0, %s212
      %s230 = sphi 0, %s230
      %s232 = sphi 0, %s230
      %s233 = sphi 0, %s232
      %s247 = sphi 0, %s233
      %s251 = sphi 0, %s251
      %s253 = sphi 0, %s251
      %s254 = sphi 0, %s253
      %s268 = sphi 0, %s254
      %s272 = sphi 0, %s272
      %s274 = sphi 0, %s272
      %s275 = sphi 0, %s274
      %s289 = sphi 0, %s275
      %s293 = sphi 0, %s293
      %s295 = sphi 0, %s293
      %s296 = sphi 0, %s295
      %s310 = sphi 0, %s296
      %s316 = sphi 0, %s318
      %s319 = sphi 0, %s316
      %s320 = sphi 0, %s319
      %s336 = sphi 0, %s320
    $region4: #{kissing_detector_forward.1} parent=1 // loop_header_branch
      %26 = sbr.rel (%p24) target = $region8
    $region5: #{kissing_detector_forward.1} parent=1 // loop_body
      %s28 = ssub.s32 %s23, 1
      %s29 = ssub.s32 %s23, 2
      %s30 = sadd.s32 %s23, 1
      %s31 = ssub.s32 %s23, %s30
      %p32 = scmp.eq.s32.totalorder %s31, 0
      %s34 = sadd.s32 %s33, 1
      %s35 = scalar_select %p32, %s33, %s34
      %p38 = pneg %p32
      %p39 = scmp.eq.s32.totalorder %s23, 1
      %p40 = por %p38, %p39
      %p41 = scmp.ne.s32.totalorder %s33, %s36
      %p42 = scmp.eq.s32.totalorder %s23, 0
      %p43 = por %p41, %p42
      %p44 = scmp.ne.s32.totalorder %s33, %s36
      %p45 = scmp.eq.s32.totalorder %s28, 1
      %p46 = por %p44, %p45
      %p47 = scmp.ne.s32.totalorder %s36, %s37
      %p48 = scmp.eq.s32.totalorder %s28, 0
      %p49 = por %p47, %p48
      %p50 = scmp.ne.s32.totalorder %s36, %s37
      %p51 = scmp.eq.s32.totalorder %s29, 1
      %p52 = por %p50, %p51
      %p54 = scmp.ne.s32.totalorder %s37, %s53
      %p55 = scmp.eq.s32.totalorder %s29, 0
      %p56 = por %p54, %p55
      %s57 = ssub.s32 %s23, %s30
      %p58 = scmp.eq.s32.totalorder %s57, 0
      %s60 = sadd.s32 %s59, 1
      %s61 = scalar_select %p58, %s59, %s60
      %p64 = pneg %p58
      %p65 = scmp.eq.s32.totalorder %s23, 1
      %p66 = por %p64, %p65
      %p67 = scmp.ne.s32.totalorder %s59, %s62
      %p68 = scmp.eq.s32.totalorder %s23, 0
      %p69 = por %p67, %p68
      %p70 = scmp.ne.s32.totalorder %s59, %s62
      %p71 = scmp.eq.s32.totalorder %s28, 1
      %p72 = por %p70, %p71
      %p73 = scmp.ne.s32.totalorder %s62, %s63
      %p74 = scmp.eq.s32.totalorder %s28, 0
      %p75 = por %p73, %p74
      %p76 = scmp.ne.s32.totalorder %s62, %s63
      %p77 = scmp.eq.s32.totalorder %s29, 1
      %p78 = por %p76, %p77
      %p80 = scmp.ne.s32.totalorder %s63, %s79
      %p81 = scmp.eq.s32.totalorder %s29, 0
      %p82 = por %p80, %p81
      %s84 = sadd.s32 %s83, 1
      %p87 = scmp.eq.s32.totalorder %s23, 1
      %p88 = scmp.ne.s32.totalorder %s83, %s85
      %p89 = scmp.eq.s32.totalorder %s23, 0
      %p90 = por %p88, %p89
      %p91 = scmp.ne.s32.totalorder %s83, %s85
      %p92 = scmp.eq.s32.totalorder %s28, 1
      %p93 = por %p91, %p92
      %p94 = scmp.ne.s32.totalorder %s85, %s86
      %p95 = scmp.eq.s32.totalorder %s28, 0
      %p96 = por %p94, %p95
      %p97 = scmp.ne.s32.totalorder %s85, %s86
      %p98 = scmp.eq.s32.totalorder %s29, 1
      %p99 = por %p97, %p98
      %p101 = scmp.ne.s32.totalorder %s86, %s100
      %p102 = scmp.eq.s32.totalorder %s29, 0
      %p103 = por %p101, %p102
      %s105 = sadd.s32 %s104, 1
      %p108 = scmp.eq.s32.totalorder %s23, 1
      %p109 = scmp.ne.s32.totalorder %s104, %s106
      %p110 = scmp.eq.s32.totalorder %s23, 0
      %p111 = por %p109, %p110
      %p112 = scmp.ne.s32.totalorder %s104, %s106
      %p113 = scmp.eq.s32.totalorder %s28, 1
      %p114 = por %p112, %p113
      %p115 = scmp.ne.s32.totalorder %s106, %s107
      %p116 = scmp.eq.s32.totalorder %s28, 0
      %p117 = por %p115, %p116
      %p118 = scmp.ne.s32.totalorder %s106, %s107
      %p119 = scmp.eq.s32.totalorder %s29, 1
      %p120 = por %p118, %p119
      %p122 = scmp.ne.s32.totalorder %s107, %s121
      %p123 = scmp.eq.s32.totalorder %s29, 0
      %p124 = por %p122, %p123
      %s126 = sadd.s32 %s125, 1
      %p129 = scmp.eq.s32.totalorder %s23, 1
      %p130 = scmp.ne.s32.totalorder %s125, %s127
      %p131 = scmp.eq.s32.totalorder %s23, 0
      %p132 = por %p130, %p131
      %p133 = scmp.ne.s32.totalorder %s125, %s127
      %p134 = scmp.eq.s32.totalorder %s28, 1
      %p135 = por %p133, %p134
      %p136 = scmp.ne.s32.totalorder %s127, %s128
      %p137 = scmp.eq.s32.totalorder %s28, 0
      %p138 = por %p136, %p137
      %p139 = scmp.ne.s32.totalorder %s127, %s128
      %p140 = scmp.eq.s32.totalorder %s29, 1
      %p141 = por %p139, %p140
      %p143 = scmp.ne.s32.totalorder %s128, %s142
      %p144 = scmp.eq.s32.totalorder %s29, 0
      %p145 = por %p143, %p144
      %s147 = sadd.s32 %s146, 1
      %p150 = scmp.eq.s32.totalorder %s23, 1
      %p151 = scmp.ne.s32.totalorder %s146, %s148
      %p152 = scmp.eq.s32.totalorder %s23, 0
      %p153 = por %p151, %p152
      %p154 = scmp.ne.s32.totalorder %s146, %s148
      %p155 = scmp.eq.s32.totalorder %s28, 1
      %p156 = por %p154, %p155
      %p157 = scmp.ne.s32.totalorder %s148, %s149
      %p158 = scmp.eq.s32.totalorder %s28, 0
      %p159 = por %p157, %p158
      %p160 = scmp.ne.s32.totalorder %s148, %s149
      %p161 = scmp.eq.s32.totalorder %s29, 1
      %p162 = por %p160, %p161
      %p164 = scmp.ne.s32.totalorder %s149, %s163
      %p165 = scmp.eq.s32.totalorder %s29, 0
      %p166 = por %p164, %p165
      %s168 = sadd.s32 %s167, 1
      %p171 = scmp.eq.s32.totalorder %s23, 1
      %p172 = scmp.ne.s32.totalorder %s167, %s169
      %p173 = scmp.eq.s32.totalorder %s23, 0
      %p174 = por %p172, %p173
      %p175 = scmp.ne.s32.totalorder %s167, %s169
      %p176 = scmp.eq.s32.totalorder %s28, 1
      %p177 = por %p175, %p176
      %p178 = scmp.ne.s32.totalorder %s169, %s170
      %p179 = scmp.eq.s32.totalorder %s28, 0
      %p180 = por %p178, %p179
      %p181 = scmp.ne.s32.totalorder %s169, %s170
      %p182 = scmp.eq.s32.totalorder %s29, 1
      %p183 = por %p181, %p182
      %p185 = scmp.ne.s32.totalorder %s170, %s184
      %p186 = scmp.eq.s32.totalorder %s29, 0
      %p187 = por %p185, %p186
      %s189 = sadd.s32 %s188, 1
      %p192 = scmp.eq.s32.totalorder %s23, 1
      %p193 = scmp.ne.s32.totalorder %s188, %s190
      %p194 = scmp.eq.s32.totalorder %s23, 0
      %p195 = por %p193, %p194
      %p196 = scmp.ne.s32.totalorder %s188, %s190
      %p197 = scmp.eq.s32.totalorder %s28, 1
      %p198 = por %p196, %p197
      %p199 = scmp.ne.s32.totalorder %s190, %s191
      %p200 = scmp.eq.s32.totalorder %s28, 0
      %p201 = por %p199, %p200
      %p202 = scmp.ne.s32.totalorder %s190, %s191
      %p203 = scmp.eq.s32.totalorder %s29, 1
      %p204 = por %p202, %p203
      %p206 = scmp.ne.s32.totalorder %s191, %s205
      %p207 = scmp.eq.s32.totalorder %s29, 0
      %p208 = por %p206, %p207
      %s210 = sadd.s32 %s209, 1
      %p213 = scmp.eq.s32.totalorder %s23, 1
      %p214 = scmp.ne.s32.totalorder %s209, %s211
      %p215 = scmp.eq.s32.totalorder %s23, 0
      %p216 = por %p214, %p215
      %p217 = scmp.ne.s32.totalorder %s209, %s211
      %p218 = scmp.eq.s32.totalorder %s28, 1
      %p219 = por %p217, %p218
      %p220 = scmp.ne.s32.totalorder %s211, %s212
      %p221 = scmp.eq.s32.totalorder %s28, 0
      %p222 = por %p220, %p221
      %p223 = scmp.ne.s32.totalorder %s211, %s212
      %p224 = scmp.eq.s32.totalorder %s29, 1
      %p225 = por %p223, %p224
      %p227 = scmp.ne.s32.totalorder %s212, %s226
      %p228 = scmp.eq.s32.totalorder %s29, 0
      %p229 = por %p227, %p228
      %s231 = sadd.s32 %s230, 1
      %p234 = scmp.eq.s32.totalorder %s23, 1
      %p235 = scmp.ne.s32.totalorder %s230, %s232
      %p236 = scmp.eq.s32.totalorder %s23, 0
      %p237 = por %p235, %p236
      %p238 = scmp.ne.s32.totalorder %s230, %s232
      %p239 = scmp.eq.s32.totalorder %s28, 1
      %p240 = por %p238, %p239
      %p241 = scmp.ne.s32.totalorder %s232, %s233
      %p242 = scmp.eq.s32.totalorder %s28, 0
      %p243 = por %p241, %p242
      %p244 = scmp.ne.s32.totalorder %s232, %s233
      %p245 = scmp.eq.s32.totalorder %s29, 1
      %p246 = por %p244, %p245
      %p248 = scmp.ne.s32.totalorder %s233, %s247
      %p249 = scmp.eq.s32.totalorder %s29, 0
      %p250 = por %p248, %p249
      %s252 = sadd.s32 %s251, 1
      %p255 = scmp.eq.s32.totalorder %s23, 1
      %p256 = scmp.ne.s32.totalorder %s251, %s253
      %p257 = scmp.eq.s32.totalorder %s23, 0
      %p258 = por %p256, %p257
      %p259 = scmp.ne.s32.totalorder %s251, %s253
      %p260 = scmp.eq.s32.totalorder %s28, 1
      %p261 = por %p259, %p260
      %p262 = scmp.ne.s32.totalorder %s253, %s254
      %p263 = scmp.eq.s32.totalorder %s28, 0
      %p264 = por %p262, %p263
      %p265 = scmp.ne.s32.totalorder %s253, %s254
      %p266 = scmp.eq.s32.totalorder %s29, 1
      %p267 = por %p265, %p266
      %p269 = scmp.ne.s32.totalorder %s254, %s268
      %p270 = scmp.eq.s32.totalorder %s29, 0
      %p271 = por %p269, %p270
      %s273 = sadd.s32 %s272, 1
      %p276 = scmp.eq.s32.totalorder %s23, 1
      %p277 = scmp.ne.s32.totalorder %s272, %s274
      %p278 = scmp.eq.s32.totalorder %s23, 0
      %p279 = por %p277, %p278
      %p280 = scmp.ne.s32.totalorder %s272, %s274
      %p281 = scmp.eq.s32.totalorder %s28, 1
      %p282 = por %p280, %p281
      %p283 = scmp.ne.s32.totalorder %s274, %s275
      %p284 = scmp.eq.s32.totalorder %s28, 0
      %p285 = por %p283, %p284
      %p286 = scmp.ne.s32.totalorder %s274, %s275
      %p287 = scmp.eq.s32.totalorder %s29, 1
      %p288 = por %p286, %p287
      %p290 = scmp.ne.s32.totalorder %s275, %s289
      %p291 = scmp.eq.s32.totalorder %s29, 0
      %p292 = por %p290, %p291
      %s294 = sadd.s32 %s293, 1
      %p297 = scmp.eq.s32.totalorder %s23, 1
      %p298 = scmp.ne.s32.totalorder %s293, %s295
      %p299 = scmp.eq.s32.totalorder %s23, 0
      %p300 = por %p298, %p299
      %p301 = scmp.ne.s32.totalorder %s293, %s295
      %p302 = scmp.eq.s32.totalorder %s28, 1
      %p303 = por %p301, %p302
      %p304 = scmp.ne.s32.totalorder %s295, %s296
      %p305 = scmp.eq.s32.totalorder %s28, 0
      %p306 = por %p304, %p305
      %p307 = scmp.ne.s32.totalorder %s295, %s296
      %p308 = scmp.eq.s32.totalorder %s29, 1
      %p309 = por %p307, %p308
      %p311 = scmp.ne.s32.totalorder %s296, %s310
      %p312 = scmp.eq.s32.totalorder %s29, 0
      %p313 = por %p311, %p312
      %s314 = ssub.s32 %s23, %s30
      %p315 = scmp.eq.s32.totalorder %s314, 0
      %s317 = sadd.s32 %s316, 1
      %s318 = scalar_select %p315, %s316, %s317
      %p321 = pneg %p315
      %p322 = scmp.eq.s32.totalorder %s23, 1
      %p323 = por %p321, %p322
      %p324 = scmp.ne.s32.totalorder %s316, %s319
      %p325 = scmp.eq.s32.totalorder %s23, 0
      %p326 = por %p324, %p325
      %p327 = scmp.ne.s32.totalorder %s316, %s319
      %p328 = scmp.eq.s32.totalorder %s28, 1
      %p329 = por %p327, %p328
      %p330 = scmp.ne.s32.totalorder %s319, %s320
      %p331 = scmp.eq.s32.totalorder %s28, 0
      %p332 = por %p330, %p331
      %p333 = scmp.ne.s32.totalorder %s319, %s320
      %p334 = scmp.eq.s32.totalorder %s29, 1
      %p335 = por %p333, %p334
      %p337 = scmp.ne.s32.totalorder %s320, %s336
      %p338 = scmp.eq.s32.totalorder %s29, 0
      %p339 = por %p337, %p338
      %p340 = scmp.le.s32.totalorder 1, %s23
      %p341 = scmp.lt.s32.totalorder %s23, 3
      %p342 = pnand %p340, %p341
      %p343 = pneg %p342
      // Predicated region
      $region9: #{kissing_detector_forward.1} parent=5 // pred_check
        _
      $region10: #{kissing_detector_forward.1} parent=5 // pred_check_branch
        %345 = sbr.rel (%p342) target = $region12
      $region11: #{kissing_detector_forward.1} parent=5 // pred_region
        %s346 = ssub.s32 %s23, 1
        // Predicated region
        $region13: #{kissing_detector_forward.1} parent=11 // pred_check
          %p347 = pneg %p96
        $region14: #{kissing_detector_forward.1} parent=11 // pred_check_branch
          %349 = sbr.rel (%p347) target = $region16
        $region15: #{kissing_detector_forward.1} parent=11 // pred_region
          _
        $region16: #{kissing_detector_forward.1} parent=11 // pred_fallthru
          _
        // Predicated region
        $region17: #{kissing_detector_forward.1} parent=11 // pred_check
          %p350 = pneg %p117
        $region18: #{kissing_detector_forward.1} parent=11 // pred_check_branch
          %352 = sbr.rel (%p350) target = $region20
        $region19: #{kissing_detector_forward.1} parent=11 // pred_region
          _
        $region20: #{kissing_detector_forward.1} parent=11 // pred_fallthru
          _
        // Predicated region
        $region21: #{kissing_detector_forward.1} parent=11 // pred_check
          %p353 = pneg %p138
        $region22: #{kissing_detector_forward.1} parent=11 // pred_check_branch
          %355 = sbr.rel (%p353) target = $region24
        $region23: #{kissing_detector_forward.1} parent=11 // pred_region
          _
        $region24: #{kissing_detector_forward.1} parent=11 // pred_fallthru
          _
        // Predicated region
        $region25: #{kissing_detector_forward.1} parent=11 // pred_check
          %p356 = pneg %p159
        $region26: #{kissing_detector_forward.1} parent=11 // pred_check_branch
          %358 = sbr.rel (%p356) target = $region28
        $region27: #{kissing_detector_forward.1} parent=11 // pred_region
          _
        $region28: #{kissing_detector_forward.1} parent=11 // pred_fallthru
          _
        // Predicated region
        $region29: #{kissing_detector_forward.1} parent=11 // pred_check
          %p359 = pneg %p180
        $region30: #{kissing_detector_forward.1} parent=11 // pred_check_branch
          %361 = sbr.rel (%p359) target = $region32
        $region31: #{kissing_detector_forward.1} parent=11 // pred_region
          _
        $region32: #{kissing_detector_forward.1} parent=11 // pred_fallthru
          _
        // Predicated region
        $region33: #{kissing_detector_forward.1} parent=11 // pred_check
          %p362 = pneg %p201
        $region34: #{kissing_detector_forward.1} parent=11 // pred_check_branch
          %364 = sbr.rel (%p362) target = $region36
        $region35: #{kissing_detector_forward.1} parent=11 // pred_region
          _
        $region36: #{kissing_detector_forward.1} parent=11 // pred_fallthru
          _
        // Predicated region
        $region37: #{kissing_detector_forward.1} parent=11 // pred_check
          %p365 = pneg %p222
        $region38: #{kissing_detector_forward.1} parent=11 // pred_check_branch
          %367 = sbr.rel (%p365) target = $region40
        $region39: #{kissing_detector_forward.1} parent=11 // pred_region
          %369 = vsyncadd [#allocation3], 0
          %s370 = sshll.u32 %s8, 4
          %s371 = int_to_ptr.hbm [resolvable:$true] %s370
          %s372 = sshll.u32 [#allocation2], 4
          %s373 = int_to_ptr.vmem [resolvable:$true] %s372
          %378 = dma.hbm_to_vmem [thread:$0]  %s371, 18432, %s373, [#allocation3], 64, 64, 4
        $region40: #{kissing_detector_forward.1} parent=11 // pred_fallthru
          _
        // Predicated region
        $region41: #{kissing_detector_forward.1} parent=11 // pred_check
          %p379 = pneg %p243
        $region42: #{kissing_detector_forward.1} parent=11 // pred_check_branch
          %381 = sbr.rel (%p379) target = $region44
        $region43: #{kissing_detector_forward.1} parent=11 // pred_region
          _
        $region44: #{kissing_detector_forward.1} parent=11 // pred_fallthru
          _
        // Predicated region
        $region45: #{kissing_detector_forward.1} parent=11 // pred_check
          %p382 = pneg %p264
        $region46: #{kissing_detector_forward.1} parent=11 // pred_check_branch
          %384 = sbr.rel (%p382) target = $region48
        $region47: #{kissing_detector_forward.1} parent=11 // pred_region
          _
        $region48: #{kissing_detector_forward.1} parent=11 // pred_fallthru
          _
        // Predicated region
        $region49: #{kissing_detector_forward.1} parent=11 // pred_check
          %p385 = pneg %p285
        $region50: #{kissing_detector_forward.1} parent=11 // pred_check_branch
          %387 = sbr.rel (%p385) target = $region52
        $region51: #{kissing_detector_forward.1} parent=11 // pred_region
          _
        $region52: #{kissing_detector_forward.1} parent=11 // pred_fallthru
          _
        // Predicated region
        $region53: #{kissing_detector_forward.1} parent=11 // pred_check
          %p388 = pneg %p306
        $region54: #{kissing_detector_forward.1} parent=11 // pred_check_branch
          %390 = sbr.rel (%p388) target = $region56
        $region55: #{kissing_detector_forward.1} parent=11 // pred_region
          _
        $region56: #{kissing_detector_forward.1} parent=11 // pred_fallthru
          _
      $region12: #{kissing_detector_forward.1} parent=5 // pred_fallthru
        _
      %p391 = scmp.lt.s32.totalorder %s23, 2
      // Predicated region
      $region57: #{kissing_detector_forward.1} parent=5 // pred_check
        %p392 = pneg %p391
      $region58: #{kissing_detector_forward.1} parent=5 // pred_check_branch
        %394 = sbr.rel (%p392) target = $region60
      $region59: #{kissing_detector_forward.1} parent=5 // pred_region
        // Predicated region
        $region61: #{kissing_detector_forward.1} parent=59 // pred_check
          %p395 = pneg %p43
        $region62: #{kissing_detector_forward.1} parent=59 // pred_check_branch
          %397 = sbr.rel (%p395) target = $region64
        $region63: #{kissing_detector_forward.1} parent=59 // pred_region
          %p398 = scmp.lt.s32.totalorder %s23, 1
          %s399 = scalar_select %p398, %s23, 1
          %s400 = smul.addr %s399, 3
          %s401 = smul.addr %s400, 4
          %s402 = scalar_lea.vmem %s0, %s401
        $region64: #{kissing_detector_forward.1} parent=59 // pred_fallthru
          _
        // Predicated region
        $region65: #{kissing_detector_forward.1} parent=59 // pred_check
          %p403 = pneg %p69
        $region66: #{kissing_detector_forward.1} parent=59 // pred_check_branch
          %405 = sbr.rel (%p403) target = $region68
        $region67: #{kissing_detector_forward.1} parent=59 // pred_region
          %p406 = scmp.lt.s32.totalorder %s23, 1
          %s407 = scalar_select %p406, %s23, 1
          %s408 = smul.addr %s407, 3
          %s409 = scalar_lea.vmem %s1, %s408
        $region68: #{kissing_detector_forward.1} parent=59 // pred_fallthru
          _
      $region60: #{kissing_detector_forward.1} parent=5 // pred_fallthru
        _
      %p410 = scmp.le.s32.totalorder 1, %s23
      %p411 = scmp.lt.s32.totalorder %s23, 3
      %p412 = pnand %p410, %p411
      %p413 = pneg %p412
      // Predicated region
      $region69: #{kissing_detector_forward.1} parent=5 // pred_check
        _
      $region70: #{kissing_detector_forward.1} parent=5 // pred_check_branch
        %415 = sbr.rel (%p412) target = $region72
      $region71: #{kissing_detector_forward.1} parent=5 // pred_region
        %s416 = ssub.s32 %s23, 1
        // Predicated region
        $region73: #{kissing_detector_forward.1} parent=71 // pred_check
          %p417 = pneg %p222
        $region74: #{kissing_detector_forward.1} parent=71 // pred_check_branch
          %419 = sbr.rel (%p417) target = $region76
        $region75: #{kissing_detector_forward.1} parent=71 // pred_region
          %421 = dma.done [#allocation3], 18432
        $region76: #{kissing_detector_forward.1} parent=71 // pred_fallthru
          _
        %p422 = scmp.lt.s32.totalorder %s28, 1
        %s423 = scalar_select %p422, %s28, 1
        %s424 = smul.addr %s423, 3
        %s425 = smul.addr %s424, 4
        %s426 = scalar_lea.vmem %s0, %s425
        %p427 = pneg %p49
        %p428 = pneg %p46
        %p429 = scmp.lt.s32.totalorder %s28, 1
        %s430 = scalar_select %p429, %s28, 1
        %s431 = smul.addr %s430, 3
        %s432 = scalar_lea.vmem %s1, %s431
        %p433 = pneg %p75
        %p434 = pneg %p72
        %p435 = pneg %p96
        %p436 = pneg %p93
        %p437 = pneg %p117
        %p438 = pneg %p114
        %p439 = pneg %p138
        %p440 = pneg %p135
        %p441 = pneg %p159
        %p442 = pneg %p156
        %p443 = pneg %p180
        %p444 = pneg %p177
        %p445 = pneg %p201
        %p446 = pneg %p198
        %p447 = pneg %p222
        %p448 = pneg %p219
        %p449 = pneg %p243
        %p450 = pneg %p240
        %p451 = pneg %p264
        %p452 = pneg %p261
        %p453 = pneg %p285
        %p454 = pneg %p282
        %p455 = pneg %p306
        %p456 = pneg %p303
        %p457 = pneg %p332
        %p458 = pneg %p329
        %s459 = sand.u32 %s319, 1
        %s460 = scalar_lea.sflag [#allocation4], %s459
        %s461 = sand.u32 %s319, 1
        %s462 = scalar_lea.vmem [#allocation5], %s461
        %p463 = scmp.lt.s32.totalorder %s28, 1
        %s464 = scalar_select %p463, %s28, 1
        %s465 = smul.addr %s464, 3
        %s466 = smul.addr %s465, 4
        %s467 = scalar_lea.vmem %s0, %s466
        %p468 = scmp.lt.s32.totalorder %s28, 1
        %s469 = scalar_select %p468, %s28, 1
        %s470 = smul.addr %s469, 3
        %s471 = scalar_lea.vmem %s1, %s470
        %v473 = vld [vmem:[%s467] sm:$0x77]
        %v474 = vld [vmem:[%s467 + $0x8] sm:$0x7]
        %477 = vst [vmem:[#allocation1] ss:$2 sm:$0xff] %v473
        %s478 = scalar_lea.vmem [#allocation1], 16
        %479 = vst [vmem:[%s478] ss:$2 sm:$0xff] %v474
        %v480 = vld.sshfl [vmem:[#allocation1] sm:$0xff pattern:$0x75316420]
        %v481 = vld.sshfl [vmem:[#allocation1 + $0x8] sm:$0xff pattern:$0x75316420]
        %v482 = vld.sshfl [vmem:[#allocation1 + $0x10] sm:$0xff pattern:$0x75316420]
        %486 = vst [vmem:[#allocation1] ss:$2 sm:$0xff] %v473
        %s487 = scalar_lea.vmem [#allocation1], 16
        %488 = vst [vmem:[%s487] ss:$2 sm:$0xff] %v474
        %v489 = vld.sshfl [vmem:[#allocation1] sm:$0xff pattern:$0x75316420]
        %v490 = vld.sshfl [vmem:[#allocation1 + $0x8] sm:$0xff pattern:$0x75316420]
        %v491 = vld.sshfl [vmem:[#allocation1 + $0x10] sm:$0xff pattern:$0x75316420]
        %v492 = vrot.slane %v489, 5
        %v493 = vrot.slane %v490, 5
        %v494 = vrot.slane %v491, 5
        %495 = vrot.lane.b32.xlu0 %v492, 127
        %v496 = vpop.permute.xlu0 %495
        %497 = vrot.lane.b32.xlu0 %v493, 127
        %v498 = vpop.permute.xlu0 %497
        %499 = vrot.lane.b32.xlu0 %v494, 127
        %v500 = vpop.permute.xlu0 %499
        %vm501 = vcmask 1039360
        %v502 = vsel %vm501, %v496, %v498
        %v503 = vsel %vm501, %v498, %v500
        %507 = vst [vmem:[#allocation1] ss:$2 sm:$0xff] %v473
        %s508 = scalar_lea.vmem [#allocation1], 16
        %509 = vst [vmem:[%s508] ss:$2 sm:$0xff] %v474
        %v510 = vld.sshfl [vmem:[#allocation1] sm:$0xff pattern:$0x75316420]
        %v511 = vld.sshfl [vmem:[#allocation1 + $0x8] sm:$0xff pattern:$0x75316420]
        %v512 = vld.sshfl [vmem:[#allocation1 + $0x10] sm:$0xff pattern:$0x75316420]
        %v513 = vrot.slane %v510, 2
        %v514 = vrot.slane %v511, 2
        %v515 = vrot.slane %v512, 2
        %516 = vrot.lane.b32.xlu0 %v513, 126
        %v517 = vpop.permute.xlu0 %516
        %518 = vrot.lane.b32.xlu0 %v514, 126
        %v519 = vpop.permute.xlu0 %518
        %520 = vrot.lane.b32.xlu0 %v515, 126
        %v521 = vpop.permute.xlu0 %520
        %vm522 = vcmask 1031168
        %v523 = vsel %vm522, %v517, %v519
        %v524 = vsel %vm522, %v519, %v521
        %528 = vst [vmem:[#allocation1] ss:$2 sm:$0xff] %v473
        %s529 = scalar_lea.vmem [#allocation1], 16
        %530 = vst [vmem:[%s529] ss:$2 sm:$0xff] %v474
        %v531 = vld.sshfl [vmem:[#allocation1] sm:$0xff pattern:$0x75316420]
        %v532 = vld.sshfl [vmem:[#allocation1 + $0x8] sm:$0xff pattern:$0x75316420]
        %v533 = vld.sshfl [vmem:[#allocation1 + $0x10] sm:$0xff pattern:$0x75316420]
        %v534 = vrot.slane %v531, 7
        %v535 = vrot.slane %v532, 7
        %v536 = vrot.slane %v533, 7
        %537 = vrot.lane.b32.xlu0 %v534, 110
        %v538 = vpop.permute.xlu0 %537
        %539 = vrot.lane.b32.xlu0 %v535, 110
        %v540 = vpop.permute.xlu0 %539
        %541 = vrot.lane.b32.xlu0 %v536, 110
        %v542 = vpop.permute.xlu0 %541
        %vm543 = vcmask 900096
        %v544 = vsel %vm543, %v538, %v540
        %v545 = vsel %vm543, %v540, %v542
        %s549 = scalar_lea.vmem [#allocation1], 1
        %550 = vst [vmem:[%s549] ss:$2 sm:$0xff] %v473
        %s551 = scalar_lea.vmem [#allocation1], 17
        %552 = vst [vmem:[%s551] ss:$2 sm:$0xff] %v474
        %v553 = vld.sshfl [vmem:[#allocation1] sm:$0xff pattern:$0x75316420]
        %v554 = vld.sshfl [vmem:[#allocation1 + $0x8] sm:$0xff pattern:$0x75316420]
        %v555 = vld.sshfl [vmem:[#allocation1 + $0x10] sm:$0xff pattern:$0x75316420]
        %556 = vrot.lane.b32.xlu0 %v553, 109
        %v557 = vpop.permute.xlu0 %556
        %558 = vrot.lane.b32.xlu0 %v554, 109
        %v559 = vpop.permute.xlu0 %558
        %560 = vrot.lane.b32.xlu0 %v555, 109
        %v561 = vpop.permute.xlu0 %560
        %vm562 = vcmask 891904
        %v563 = vsel %vm562, %v557, %v559
        %v564 = vsel %vm562, %v559, %v561
        %568 = vst [vmem:[#allocation1] ss:$2 sm:$0xff] %v473
        %s569 = scalar_lea.vmem [#allocation1], 16
        %570 = vst [vmem:[%s569] ss:$2 sm:$0xff] %v474
        %v571 = vld.sshfl [vmem:[#allocation1] sm:$0xff pattern:$0x75316420]
        %v572 = vld.sshfl [vmem:[#allocation1 + $0x8] sm:$0xff pattern:$0x75316420]
        %v573 = vld.sshfl [vmem:[#allocation1 + $0x10] sm:$0xff pattern:$0x75316420]
        %v574 = vrot.slane %v571, 1
        %v575 = vrot.slane %v572, 1
        %v576 = vrot.slane %v573, 1
        %577 = vrot.lane.b32.xlu0 %v574, 108
        %v578 = vpop.permute.xlu0 %577
        %579 = vrot.lane.b32.xlu0 %v575, 108
        %v580 = vpop.permute.xlu0 %579
        %581 = vrot.lane.b32.xlu0 %v576, 108
        %v582 = vpop.permute.xlu0 %581
        %vm583 = vcmask 883712
        %v584 = vsel %vm583, %v578, %v580
        %v585 = vsel %vm583, %v580, %v582
        %589 = vst [vmem:[#allocation1] ss:$2 sm:$0xff] %v473
        %s590 = scalar_lea.vmem [#allocation1], 16
        %591 = vst [vmem:[%s590] ss:$2 sm:$0xff] %v474
        %v592 = vld.sshfl [vmem:[#allocation1] sm:$0xff pattern:$0x75316420]
        %v593 = vld.sshfl [vmem:[#allocation1 + $0x8] sm:$0xff pattern:$0x75316420]
        %v594 = vld.sshfl [vmem:[#allocation1 + $0x10] sm:$0xff pattern:$0x75316420]
        %v595 = vrot.slane %v592, 6
        %v596 = vrot.slane %v593, 6
        %v597 = vrot.slane %v594, 6
        %598 = vrot.lane.b32.xlu0 %v595, 92
        %v599 = vpop.permute.xlu0 %598
        %600 = vrot.lane.b32.xlu0 %v596, 92
        %v601 = vpop.permute.xlu0 %600
        %602 = vrot.lane.b32.xlu0 %v597, 92
        %v603 = vpop.permute.xlu0 %602
        %vm604 = vcmask 752640
        %v605 = vsel %vm604, %v599, %v601
        %v606 = vsel %vm604, %v601, %v603
        %610 = vst [vmem:[#allocation1] ss:$2 sm:$0xff] %v473
        %s611 = scalar_lea.vmem [#allocation1], 16
        %612 = vst [vmem:[%s611] ss:$2 sm:$0xff] %v474
        %v613 = vld.sshfl [vmem:[#allocation1] sm:$0xff pattern:$0x75316420]
        %v614 = vld.sshfl [vmem:[#allocation1 + $0x8] sm:$0xff pattern:$0x75316420]
        %v615 = vld.sshfl [vmem:[#allocation1 + $0x10] sm:$0xff pattern:$0x75316420]
        %v616 = vrot.slane %v613, 3
        %v617 = vrot.slane %v614, 3
        %v618 = vrot.slane %v615, 3
        %619 = vrot.lane.b32.xlu0 %v616, 91
        %v620 = vpop.permute.xlu0 %619
        %621 = vrot.lane.b32.xlu0 %v617, 91
        %v622 = vpop.permute.xlu0 %621
        %623 = vrot.lane.b32.xlu0 %v618, 91
        %v624 = vpop.permute.xlu0 %623
        %vm625 = vcmask 744448
        %v626 = vsel %vm625, %v620, %v622
        %v627 = vsel %vm625, %v622, %v624
        %631 = vst [vmem:[#allocation1] ss:$2 sm:$0xff] %v473
        %s632 = scalar_lea.vmem [#allocation1], 16
        %633 = vst [vmem:[%s632] ss:$2 sm:$0xff] %v474
        %v634 = vld.sshfl [vmem:[#allocation1] sm:$0xff pattern:$0x75316420]
        %v635 = vld.sshfl [vmem:[#allocation1 + $0x8] sm:$0xff pattern:$0x75316420]
        %v636 = vld.sshfl [vmem:[#allocation1 + $0x10] sm:$0xff pattern:$0x75316420]
        %637 = vrot.lane.b32.xlu0 %v634, 90
        %v638 = vpop.permute.xlu0 %637
        %639 = vrot.lane.b32.xlu0 %v635, 90
        %v640 = vpop.permute.xlu0 %639
        %641 = vrot.lane.b32.xlu0 %v636, 90
        %v642 = vpop.permute.xlu0 %641
        %vm643 = vcmask 736256
        %v644 = vsel %vm643, %v638, %v640
        %v645 = vsel %vm643, %v640, %v642
        %vm649 = vcmask 1042432
        %v650 = vsel %vm649, %v480, %v502
        %v651 = vsel %vm649, %v481, %v503
        %v652 = vsel %vm649, %v482, %v500
        %vm653 = vcmask 1045504
        %v654 = vsel %vm653, %v650, %v523
        %v655 = vsel %vm653, %v651, %v524
        %v656 = vsel %vm653, %v652, %v521
        %vm657 = vcmask 1040384
        %v658 = vsel %vm657, %v523, %v544
        %v659 = vsel %vm657, %v524, %v545
        %v660 = vsel %vm657, %v521, %v542
        %vm661 = vcmask 1043456
        %v662 = vsel %vm661, %v658, %v563
        %v663 = vsel %vm661, %v659, %v564
        %v664 = vsel %vm661, %v660, %v561
        %vm665 = vcmask 1046528
        %v666 = vsel %vm665, %v662, %v584
        %v667 = vsel %vm665, %v663, %v585
        %v668 = vsel %vm665, %v664, %v582
        %vm669 = vcmask 1041408
        %v670 = vsel %vm669, %v584, %v605
        %v671 = vsel %vm669, %v585, %v606
        %v672 = vsel %vm669, %v582, %v603
        %vm673 = vcmask 1044480
        %v674 = vsel %vm673, %v670, %v626
        %v675 = vsel %vm673, %v671, %v627
        %v676 = vsel %vm673, %v672, %v624
        %v677 = vpack.c.bf16 %v666, %v654
        %v678 = vpack.c.bf16 %v667, %v655
        %v679 = vpack.c.bf16 %v668, %v656
        %v680 = vpack.c.bf16 %v644, %v674
        %v681 = vpack.c.bf16 %v645, %v675
        %v682 = vpack.c.bf16 %v642, %v676
        %v683 = vld [vmem:[%s2] sm:$0xf]
        %v684 = vld [vmem:[%s3] sm:$0xff]
        %686 = vset.pattern.permute.xlu0 0
        %687 = vperm.xlu0 %686, %v684
        %v688 = vpop.permute.xlu0 %687
        %vm690 = vcmask 220160
        %v692 = vsel %vm690, %v683, 0
        %v694 = vsel %vm673, 4294967295, 65535
        %v695 = vsel %vm653, %v694, 0
        %v697 = vand.u32 %v680, %v695
        %v700 = vand.u32 %v681, %v695
        %v703 = vand.u32 %v682, %v695
        %705 = vmatpush.bf16.msra.mxu0 0
        %706 = vmatpush.bf16.msra.mxu0 0
        %707 = vmatpush.bf16.msra.mxu0 0
        %708 = vmatpush.bf16.msra.mxu0 0
        %709 = vmatpush.bf16.msra.mxu0 0
        %710 = vmatpush.bf16.msra.mxu0 0
        %711 = vmatpush.bf16.msra.mxu0 %v697
        %712 = vmatpush.bf16.msra.mxu0 %v677
        %713 = vmatmul.bf16.gmra.mxu0 %v692
        %v714 = vpop.f32.mrf.mxu0
        %v715 = vadd.f32 %v688, %v714
        %v716 = vpop.f32.mrf.mxu0
        %717 = vdwg.mxu0
        %718 = vmatpush.bf16.msra.mxu0 0
        %719 = vmatpush.bf16.msra.mxu0 0
        %720 = vmatpush.bf16.msra.mxu0 0
        %721 = vmatpush.bf16.msra.mxu0 0
        %722 = vmatpush.bf16.msra.mxu0 0
        %723 = vmatpush.bf16.msra.mxu0 0
        %724 = vmatpush.bf16.msra.mxu0 %v700
        %725 = vmatpush.bf16.msra.mxu0 %v678
        %726 = vmatmul.bf16.gmra.mxu0 %v692
        %v727 = vpop.f32.mrf.mxu0
        %v728 = vadd.f32 %v688, %v727
        %v729 = vpop.f32.mrf.mxu0
        %730 = vdwg.mxu0
        %731 = vmatpush.bf16.msra.mxu0 0
        %732 = vmatpush.bf16.msra.mxu0 0
        %733 = vmatpush.bf16.msra.mxu0 0
        %734 = vmatpush.bf16.msra.mxu0 0
        %735 = vmatpush.bf16.msra.mxu0 0
        %736 = vmatpush.bf16.msra.mxu0 0
        %737 = vmatpush.bf16.msra.mxu0 %v703
        %738 = vmatpush.bf16.msra.mxu0 %v679
        %739 = vmatmul.bf16.gmra.mxu0 %v692
        %v740 = vpop.f32.mrf.mxu0
        %v741 = vadd.f32 %v688, %v740
        %v742 = vpop.f32.mrf.mxu0
        %743 = vdwg.mxu0
        %v744 = vmax.f32 %v715, 0.0
        %v745 = vmax.f32 %v728, 0.0
        %v746 = vmax.f32 %v741, 0.0
        %v747 = vlaneseq
        %v748 = vand.u32 %v747, 127
        %v749 = vadd.s32 %v748, 128
        %v750 = vadd.s32 %v748, 256
        %vm751 = vcmp.lt.s32.totalorder %v748, 0
        %v752 = vsub.s32 0, %v748
        %v753 = vsel %vm751, %v752, %v748
        %v754 = vand.u32 %v753, 65535
        %v755 = vshrl.u32 %v753, 16
        %v757 = vmul.u32 %v754, 14564
        %v758 = vmul.u32 %v754, 58254
        %v759 = vmul.u32 %v755, 14564
        %v760 = vmul.u32 %v755, 58254
        %v761 = vshll.u32 %v758, 16
        %v762 = vshrl.u32 %v758, 16
        %v763 = vshll.u32 %v759, 16
        %v764 = vshrl.u32 %v759, 16
        %vm765 = vc.u32 %v757, %v761
        %v766 = vsel %vm765, 1, 0
        %v767 = vadd.s32 %v757, %v761
        %v768 = vadd.s32 %v760, %v766
        %vm769 = vc.u32 %v767, %v763
        %v770 = vsel %vm769, 1, 0
        %v771 = vadd.s32 %v767, %v763
        %v772 = vadd.s32 %v768, %v770
        %v773 = vadd.s32 %v772, %v762
        %v774 = vadd.s32 %v773, %v764
        %v775 = vshrl.u32 %v774, 4
        %v776 = vmul.u32 %v775, 18
        %v777 = vsub.s32 %v753, %v776
        %v778 = vsub.s32 0, %v777
        %v779 = vsel %vm751, %v778, %v777
        %vm780 = vcmp.lt.s32.totalorder %v749, 0
        %v781 = vsub.s32 0, %v749
        %v782 = vsel %vm780, %v781, %v749
        %v783 = vand.u32 %v782, 65535
        %v784 = vshrl.u32 %v782, 16
        %v786 = vmul.u32 %v783, 14564
        %v787 = vmul.u32 %v783, 58254
        %v788 = vmul.u32 %v784, 14564
        %v789 = vmul.u32 %v784, 58254
        %v790 = vshll.u32 %v787, 16
        %v791 = vshrl.u32 %v787, 16
        %v792 = vshll.u32 %v788, 16
        %v793 = vshrl.u32 %v788, 16
        %vm794 = vc.u32 %v786, %v790
        %v795 = vsel %vm794, 1, 0
        %v796 = vadd.s32 %v786, %v790
        %v797 = vadd.s32 %v789, %v795
        %vm798 = vc.u32 %v796, %v792
        %v799 = vsel %vm798, 1, 0
        %v800 = vadd.s32 %v796, %v792
        %v801 = vadd.s32 %v797, %v799
        %v802 = vadd.s32 %v801, %v791
        %v803 = vadd.s32 %v802, %v793
        %v804 = vshrl.u32 %v803, 4
        %v805 = vmul.u32 %v804, 18
        %v806 = vsub.s32 %v782, %v805
        %v807 = vsub.s32 0, %v806
        %v808 = vsel %vm780, %v807, %v806
        %vm809 = vcmp.lt.s32.totalorder %v750, 0
        %v810 = vsub.s32 0, %v750
        %v811 = vsel %vm809, %v810, %v750
        %v812 = vand.u32 %v811, 65535
        %v813 = vshrl.u32 %v811, 16
        %v815 = vmul.u32 %v812, 14564
        %v816 = vmul.u32 %v812, 58254
        %v817 = vmul.u32 %v813, 14564
        %v818 = vmul.u32 %v813, 58254
        %v819 = vshll.u32 %v816, 16
        %v820 = vshrl.u32 %v816, 16
        %v821 = vshll.u32 %v817, 16
        %v822 = vshrl.u32 %v817, 16
        %vm823 = vc.u32 %v815, %v819
        %v824 = vsel %vm823, 1, 0
        %v825 = vadd.s32 %v815, %v819
        %v826 = vadd.s32 %v818, %v824
        %vm827 = vc.u32 %v825, %v821
        %v828 = vsel %vm827, 1, 0
        %v829 = vadd.s32 %v825, %v821
        %v830 = vadd.s32 %v826, %v828
        %v831 = vadd.s32 %v830, %v820
        %v832 = vadd.s32 %v831, %v822
        %v833 = vshrl.u32 %v832, 4
        %v834 = vmul.u32 %v833, 18
        %v835 = vsub.s32 %v811, %v834
        %v836 = vsub.s32 0, %v835
        %v837 = vsel %vm809, %v836, %v835
        %vm838 = vcmp.ne.s32.totalorder %v779, 0
        %vm839 = vcmp.ne.s32.totalorder %v808, 0
        %vm840 = vcmp.ne.s32.totalorder %v837, 0
        %vm841 = vcmp.lt.s32.totalorder %v779, 0
        %vm842 = vcmp.lt.s32.totalorder %v808, 0
        %vm843 = vcmp.lt.s32.totalorder %v837, 0
        %vm844 = vmand %vm841, %vm838
        %vm845 = vmand %vm842, %vm839
        %vm846 = vmand %vm843, %vm840
        %v847 = vadd.s32 %v779, 18
        %v848 = vadd.s32 %v808, 18
        %v849 = vadd.s32 %v837, 18
        %v850 = vsel %vm844, %v847, %v779
        %v851 = vsel %vm845, %v848, %v808
        %v852 = vsel %vm846, %v849, %v837
        %vm853 = vcmp.lt.s32.totalorder %v850, 16
        %vm854 = vcmp.lt.s32.totalorder %v851, 16
        %vm855 = vcmp.lt.s32.totalorder %v852, 16
        %v856 = vsel %vm853, 0.00390625, 0.0
        %v857 = vsel %vm854, 0.00390625, 0.0
        %v858 = vsel %vm855, 0.00390625, 0.0
        %vm859 = vcmask 261120
        %v861 = vsel %vm859, %v858, 0
        %v864 = vsel %vm859, %v746, 0
        %866 = vmatpush.xpose.msra.mxu0 0.0
        %867 = vmatpush.xpose.msra.mxu0 0.0
        %868 = vmatpush.xpose.msra.mxu0 0.0
        %869 = vmatpush.xpose.msra.mxu0 0.0
        %870 = vmatpush.xpose.msra.mxu0 0.0
        %871 = vmatpush.xpose.msra.mxu0 0.0
        %872 = vmatpush.xpose.msra.mxu0 0.0
        %873 = vmatpush.xpose.msra.mxu0 0.0
        %874 = vmatpush.xpose.msra.mxu0 0.0
        %875 = vmatpush.xpose.msra.mxu0 0.0
        %876 = vmatpush.xpose.msra.mxu0 0.0
        %877 = vmatpush.xpose.msra.mxu0 0.0
        %878 = vmatpush.xpose.msra.mxu0 0.0
        %879 = vmatpush.xpose.msra.mxu0 0.0
        %880 = vmatpush.xpose.msra.mxu0 0.0
        %881 = vmatpush.xpose.msra.mxu0 %v744
        %882 = vmatmul.f32.gmra.mxu0 %v856
        %v883 = vpop.f32.mrf.mxu0
        %v884 = vadd.f32 0.0, %v883
        %885 = vdwg.mxu0
        %886 = vmatpush.xpose.msra.mxu0 0.0
        %887 = vmatpush.xpose.msra.mxu0 0.0
        %888 = vmatpush.xpose.msra.mxu0 0.0
        %889 = vmatpush.xpose.msra.mxu0 0.0
        %890 = vmatpush.xpose.msra.mxu0 0.0
        %891 = vmatpush.xpose.msra.mxu0 0.0
        %892 = vmatpush.xpose.msra.mxu0 0.0
        %893 = vmatpush.xpose.msra.mxu0 0.0
        %894 = vmatpush.xpose.msra.mxu0 0.0
        %895 = vmatpush.xpose.msra.mxu0 0.0
        %896 = vmatpush.xpose.msra.mxu0 0.0
        %897 = vmatpush.xpose.msra.mxu0 0.0
        %898 = vmatpush.xpose.msra.mxu0 0.0
        %899 = vmatpush.xpose.msra.mxu0 0.0
        %900 = vmatpush.xpose.msra.mxu0 0.0
        %901 = vmatpush.xpose.msra.mxu0 %v745
        %902 = vmatmul.f32.gmra.mxu0 %v857
        %v903 = vpop.f32.mrf.mxu0
        %v904 = vadd.f32 %v884, %v903
        %905 = vdwg.mxu0
        %906 = vmatpush.xpose.msra.mxu0 0.0
        %907 = vmatpush.xpose.msra.mxu0 0.0
        %908 = vmatpush.xpose.msra.mxu0 0.0
        %909 = vmatpush.xpose.msra.mxu0 0.0
        %910 = vmatpush.xpose.msra.mxu0 0.0
        %911 = vmatpush.xpose.msra.mxu0 0.0
        %912 = vmatpush.xpose.msra.mxu0 0.0
        %913 = vmatpush.xpose.msra.mxu0 0.0
        %914 = vmatpush.xpose.msra.mxu0 0.0
        %915 = vmatpush.xpose.msra.mxu0 0.0
        %916 = vmatpush.xpose.msra.mxu0 0.0
        %917 = vmatpush.xpose.msra.mxu0 0.0
        %918 = vmatpush.xpose.msra.mxu0 0.0
        %919 = vmatpush.xpose.msra.mxu0 0.0
        %920 = vmatpush.xpose.msra.mxu0 0.0
        %921 = vmatpush.xpose.msra.mxu0 %v864
        %922 = vmatmul.f32.gmra.mxu0 %v861
        %v923 = vpop.f32.mrf.mxu0
        %v924 = vadd.f32 %v904, %v923
        %925 = vdwg.mxu0
        %v926 = vld [vmem:[%s6] sm:$0xff]
        %v927 = vld [vmem:[%s7] sm:$0x1]
        %vm928 = vcmask 64512
        %v930 = vsel %vm928, %v924, 0
        %932 = vmatpush.msra.mxu0 0.0
        %933 = vmatpush.msra.mxu0 0.0
        %934 = vmatpush.msra.mxu0 0.0
        %935 = vmatpush.msra.mxu0 0.0
        %936 = vmatpush.msra.mxu0 0.0
        %937 = vmatpush.msra.mxu0 0.0
        %938 = vmatpush.msra.mxu0 0.0
        %939 = vmatpush.msra.mxu0 0.0
        %940 = vmatpush.msra.mxu0 0.0
        %941 = vmatpush.msra.mxu0 0.0
        %942 = vmatpush.msra.mxu0 0.0
        %943 = vmatpush.msra.mxu0 0.0
        %944 = vmatpush.msra.mxu0 0.0
        %945 = vmatpush.msra.mxu0 0.0
        %946 = vmatpush.msra.mxu0 0.0
        %947 = vmatpush.msra.mxu0 %v926
        %948 = vmatmul.f32.gmra.mxu0 %v930
        %v949 = vpop.f32.mrf.mxu0
        %v950 = vadd.f32 %v927, %v949
        %951 = vdwg.mxu0
        %v952 = vld [vmem:[%s471] sm:$0x7]
        %v954 = vperm.slane %v952, 0
        %v955 = vperm.slane %v952, 1
        %v956 = vperm.slane %v952, 2
        %960 = vrot.lane.b32.xlu0 %v954, 127
        %v961 = vpop.permute.xlu0 %960
        %962 = vrot.lane.b32.xlu0 %v955, 127
        %v963 = vpop.permute.xlu0 %962
        %964 = vrot.lane.b32.xlu0 %v956, 127
        %v965 = vpop.permute.xlu0 %964
        %v966 = vsel %vm501, %v961, %v963
        %v967 = vsel %vm501, %v963, %v965
        %971 = vrot.lane.b32.xlu0 %v954, 126
        %v972 = vpop.permute.xlu0 %971
        %973 = vrot.lane.b32.xlu0 %v955, 126
        %v974 = vpop.permute.xlu0 %973
        %975 = vrot.lane.b32.xlu0 %v956, 126
        %v976 = vpop.permute.xlu0 %975
        %v977 = vsel %vm522, %v972, %v974
        %v978 = vsel %vm522, %v974, %v976
        %982 = vrot.lane.b32.xlu0 %v954, 110
        %v983 = vpop.permute.xlu0 %982
        %984 = vrot.lane.b32.xlu0 %v955, 110
        %v985 = vpop.permute.xlu0 %984
        %986 = vrot.lane.b32.xlu0 %v956, 110
        %v987 = vpop.permute.xlu0 %986
        %v988 = vsel %vm543, %v983, %v985
        %v989 = vsel %vm543, %v985, %v987
        %993 = vrot.lane.b32.xlu0 %v954, 109
        %v994 = vpop.permute.xlu0 %993
        %995 = vrot.lane.b32.xlu0 %v955, 109
        %v996 = vpop.permute.xlu0 %995
        %997 = vrot.lane.b32.xlu0 %v956, 109
        %v998 = vpop.permute.xlu0 %997
        %v999 = vsel %vm562, %v994, %v996
        %v1000 = vsel %vm562, %v996, %v998
        %1004 = vrot.lane.b32.xlu0 %v954, 108
        %v1005 = vpop.permute.xlu0 %1004
        %1006 = vrot.lane.b32.xlu0 %v955, 108
        %v1007 = vpop.permute.xlu0 %1006
        %1008 = vrot.lane.b32.xlu0 %v956, 108
        %v1009 = vpop.permute.xlu0 %1008
        %v1010 = vsel %vm583, %v1005, %v1007
        %v1011 = vsel %vm583, %v1007, %v1009
        %1015 = vrot.lane.b32.xlu0 %v954, 92
        %v1016 = vpop.permute.xlu0 %1015
        %1017 = vrot.lane.b32.xlu0 %v955, 92
        %v1018 = vpop.permute.xlu0 %1017
        %1019 = vrot.lane.b32.xlu0 %v956, 92
        %v1020 = vpop.permute.xlu0 %1019
        %v1021 = vsel %vm604, %v1016, %v1018
        %v1022 = vsel %vm604, %v1018, %v1020
        %1026 = vrot.lane.b32.xlu0 %v954, 91
        %v1027 = vpop.permute.xlu0 %1026
        %1028 = vrot.lane.b32.xlu0 %v955, 91
        %v1029 = vpop.permute.xlu0 %1028
        %1030 = vrot.lane.b32.xlu0 %v956, 91
        %v1031 = vpop.permute.xlu0 %1030
        %v1032 = vsel %vm625, %v1027, %v1029
        %v1033 = vsel %vm625, %v1029, %v1031
        %1037 = vrot.lane.b32.xlu0 %v954, 90
        %v1038 = vpop.permute.xlu0 %1037
        %1039 = vrot.lane.b32.xlu0 %v955, 90
        %v1040 = vpop.permute.xlu0 %1039
        %1041 = vrot.lane.b32.xlu0 %v956, 90
        %v1042 = vpop.permute.xlu0 %1041
        %v1043 = vsel %vm643, %v1038, %v1040
        %v1044 = vsel %vm643, %v1040, %v1042
        %v1048 = vsel %vm657, %v954, %v966
        %v1049 = vsel %vm657, %v955, %v967
        %v1050 = vsel %vm657, %v956, %v965
        %v1051 = vsel %vm669, %v1048, %v977
        %v1052 = vsel %vm669, %v1049, %v978
        %v1053 = vsel %vm669, %v1050, %v976
        %v1054 = vsel %vm649, %v1051, %v988
        %v1055 = vsel %vm649, %v1052, %v989
        %v1056 = vsel %vm649, %v1053, %v987
        %v1057 = vsel %vm661, %v1054, %v999
        %v1058 = vsel %vm661, %v1055, %v1000
        %v1059 = vsel %vm661, %v1056, %v998
        %v1060 = vsel %vm673, %v1057, %v1010
        %v1061 = vsel %vm673, %v1058, %v1011
        %v1062 = vsel %vm673, %v1059, %v1009
        %v1063 = vsel %vm653, %v1060, %v1021
        %v1064 = vsel %vm653, %v1061, %v1022
        %v1065 = vsel %vm653, %v1062, %v1020
        %v1066 = vsel %vm665, %v1063, %v1032
        %v1067 = vsel %vm665, %v1064, %v1033
        %v1068 = vsel %vm665, %v1065, %v1031
        %v1069 = vpack.c.bf16 %v1043, %v1066
        %v1070 = vpack.c.bf16 %v1044, %v1067
        %v1071 = vpack.c.bf16 %v1042, %v1068
        %v1072 = vld [vmem:[%s4] sm:$0xf]
        %v1073 = vld [vmem:[%s5] sm:$0xff]
        %1075 = vset.pattern.permute.xlu0 0
        %1076 = vperm.xlu0 %1075, %v1073
        %v1077 = vpop.permute.xlu0 %1076
        %vm1079 = vcmask 72704
        %v1081 = vsel %vm1079, %v1072, 0
        %v1083 = vsel %vm661, 4294967295, 65535
        %v1084 = vsel %vm673, %v1083, 0
        %v1086 = vand.u32 %v1069, %v1084
        %v1089 = vand.u32 %v1070, %v1084
        %v1092 = vand.u32 %v1071, %v1084
        %1094 = vmatpush.bf16.msra.mxu0 0
        %1095 = vmatpush.bf16.msra.mxu0 0
        %1096 = vmatpush.bf16.msra.mxu0 0
        %1097 = vmatpush.bf16.msra.mxu0 0
        %1098 = vmatpush.bf16.msra.mxu0 0
        %1099 = vmatpush.bf16.msra.mxu0 0
        %1100 = vmatpush.bf16.msra.mxu0 0
        %1101 = vmatpush.bf16.msra.mxu0 %v1086
        %1102 = vmatmul.bf16.gmra.mxu0 %v1081
        %v1103 = vpop.f32.mrf.mxu0
        %v1104 = vadd.f32 %v1077, %v1103
        %v1105 = vpop.f32.mrf.mxu0
        %1106 = vdwg.mxu0
        %1107 = vmatpush.bf16.msra.mxu0 0
        %1108 = vmatpush.bf16.msra.mxu0 0
        %1109 = vmatpush.bf16.msra.mxu0 0
        %1110 = vmatpush.bf16.msra.mxu0 0
        %1111 = vmatpush.bf16.msra.mxu0 0
        %1112 = vmatpush.bf16.msra.mxu0 0
        %1113 = vmatpush.bf16.msra.mxu0 0
        %1114 = vmatpush.bf16.msra.mxu0 %v1089
        %1115 = vmatmul.bf16.gmra.mxu0 %v1081
        %v1116 = vpop.f32.mrf.mxu0
        %v1117 = vadd.f32 %v1077, %v1116
        %v1118 = vpop.f32.mrf.mxu0
        %1119 = vdwg.mxu0
        %1120 = vmatpush.bf16.msra.mxu0 0
        %1121 = vmatpush.bf16.msra.mxu0 0
        %1122 = vmatpush.bf16.msra.mxu0 0
        %1123 = vmatpush.bf16.msra.mxu0 0
        %1124 = vmatpush.bf16.msra.mxu0 0
        %1125 = vmatpush.bf16.msra.mxu0 0
        %1126 = vmatpush.bf16.msra.mxu0 0
        %1127 = vmatpush.bf16.msra.mxu0 %v1092
        %1128 = vmatmul.bf16.gmra.mxu0 %v1081
        %v1129 = vpop.f32.mrf.mxu0
        %v1130 = vadd.f32 %v1077, %v1129
        %v1131 = vpop.f32.mrf.mxu0
        %1132 = vdwg.mxu0
        %v1133 = vmax.f32 %v1104, 0.0
        %v1134 = vmax.f32 %v1117, 0.0
        %v1135 = vmax.f32 %v1130, 0.0
        %1139 = vrot.lane.b32.xlu0 %v1133, 127
        %v1140 = vpop.permute.xlu0 %1139
        %1141 = vrot.lane.b32.xlu0 %v1134, 127
        %v1142 = vpop.permute.xlu0 %1141
        %1143 = vrot.lane.b32.xlu0 %v1135, 127
        %v1144 = vpop.permute.xlu0 %1143
        %v1145 = vsel %vm501, %v1140, %v1142
        %v1146 = vsel %vm501, %v1142, %v1144
        %1150 = vrot.lane.b32.xlu0 %v1133, 31
        %v1151 = vpop.permute.xlu0 %1150
        %vm1153 = vcmask 252928
        %v1154 = vsel %vm1153, %v1144, %v1151
        %v1155 = vmax.f32 %v1133, %v1145
        %v1156 = vmax.f32 %v1134, %v1146
        %v1157 = vmax.f32 %v1135, %v1154
        %1161 = vrot.lane.b32.xlu0 %v1155, 110
        %v1162 = vpop.permute.xlu0 %1161
        %1163 = vrot.lane.b32.xlu0 %v1156, 110
        %v1164 = vpop.permute.xlu0 %1163
        %1165 = vrot.lane.b32.xlu0 %v1157, 110
        %v1166 = vpop.permute.xlu0 %1165
        %v1167 = vsel %vm543, %v1162, %v1164
        %v1168 = vsel %vm543, %v1164, %v1166
        %1172 = vrot.lane.b32.xlu0 %v1155, 14
        %v1173 = vpop.permute.xlu0 %1172
        %vm1175 = vcmask 113664
        %v1176 = vsel %vm1175, %v1166, %v1173
        %v1177 = vmax.f32 %v1155, %v1167
        %v1178 = vmax.f32 %v1156, %v1168
        %v1179 = vmax.f32 %v1157, %v1176
        %v1183 = vrot.slane %v1177, 1
        %v1184 = vrot.slane %v1178, 1
        %v1185 = vrot.slane %v1179, 1
        %1186 = vrot.lane.b32.xlu0 %v1183, 32
        %v1187 = vpop.permute.xlu0 %1186
        %1188 = vrot.lane.b32.xlu0 %v1184, 32
        %v1189 = vpop.permute.xlu0 %1188
        %1190 = vrot.lane.b32.xlu0 %v1185, 32
        %v1191 = vpop.permute.xlu0 %1190
        %v1192 = vsel %vm859, %v1187, %v1189
        %v1193 = vsel %vm859, %v1189, %v1191
        %v1197 = vrot.slane %v1177, 2
        %v1198 = vrot.slane %v1178, 2
        %v1199 = vrot.slane %v1179, 2
        %1200 = vrot.lane.b32.xlu0 %v1197, 64
        %v1201 = vpop.permute.xlu0 %1200
        %1202 = vrot.lane.b32.xlu0 %v1198, 64
        %v1203 = vpop.permute.xlu0 %1202
        %1204 = vrot.lane.b32.xlu0 %v1199, 64
        %v1205 = vpop.permute.xlu0 %1204
        %vm1206 = vcmask 523264
        %v1207 = vsel %vm1206, %v1201, %v1203
        %v1208 = vsel %vm1206, %v1203, %v1205
        %v1212 = vrot.slane %v1177, 3
        %v1213 = vrot.slane %v1178, 3
        %v1214 = vrot.slane %v1179, 3
        %1215 = vrot.lane.b32.xlu0 %v1212, 96
        %v1216 = vpop.permute.xlu0 %1215
        %1217 = vrot.lane.b32.xlu0 %v1213, 96
        %v1218 = vpop.permute.xlu0 %1217
        %1219 = vrot.lane.b32.xlu0 %v1214, 96
        %v1220 = vpop.permute.xlu0 %1219
        %vm1221 = vcmask 785408
        %v1222 = vsel %vm1221, %v1216, %v1218
        %v1223 = vsel %vm1221, %v1218, %v1220
        %v1227 = vrot.slane %v1177, 4
        %v1228 = vrot.slane %v1178, 4
        %v1229 = vrot.slane %v1179, 4
        %v1233 = vrot.slane %v1177, 5
        %v1234 = vrot.slane %v1178, 5
        %v1235 = vrot.slane %v1179, 5
        %1236 = vrot.lane.b32.xlu0 %v1233, 32
        %v1237 = vpop.permute.xlu0 %1236
        %1238 = vrot.lane.b32.xlu0 %v1234, 32
        %v1239 = vpop.permute.xlu0 %1238
        %1240 = vrot.lane.b32.xlu0 %v1235, 32
        %v1241 = vpop.permute.xlu0 %1240
        %v1242 = vsel %vm859, %v1237, %v1239
        %v1243 = vsel %vm859, %v1239, %v1241
        %v1247 = vrot.slane %v1177, 6
        %v1248 = vrot.slane %v1178, 6
        %v1249 = vrot.slane %v1179, 6
        %1250 = vrot.lane.b32.xlu0 %v1247, 64
        %v1251 = vpop.permute.xlu0 %1250
        %1252 = vrot.lane.b32.xlu0 %v1248, 64
        %v1253 = vpop.permute.xlu0 %1252
        %1254 = vrot.lane.b32.xlu0 %v1249, 64
        %v1255 = vpop.permute.xlu0 %1254
        %v1256 = vsel %vm1206, %v1251, %v1253
        %v1257 = vsel %vm1206, %v1253, %v1255
        %v1261 = vrot.slane %v1177, 7
        %v1262 = vrot.slane %v1178, 7
        %v1263 = vrot.slane %v1179, 7
        %1264 = vrot.lane.b32.xlu0 %v1261, 96
        %v1265 = vpop.permute.xlu0 %1264
        %1266 = vrot.lane.b32.xlu0 %v1262, 96
        %v1267 = vpop.permute.xlu0 %1266
        %1268 = vrot.lane.b32.xlu0 %v1263, 96
        %v1269 = vpop.permute.xlu0 %1268
        %v1270 = vsel %vm1221, %v1265, %v1267
        %v1271 = vsel %vm1221, %v1267, %v1269
        %v1275 = vsel %vm859, %v1179, %v1187
        %v1276 = vsel %vm1206, %v1193, %v1201
        %v1277 = vsel %vm1221, %v1208, %v1216
        %v1278 = vsel %vm859, %v1229, %v1237
        %v1279 = vsel %vm1206, %v1243, %v1251
        %v1280 = vsel %vm1221, %v1257, %v1265
        %v1281 = vpack.c.bf16 %v1177, %v1177
        %v1282 = vpack.c.bf16 %v1178, %v1178
        %v1283 = vpack.c.bf16 %v1275, %v1275
        %v1284 = vpack.c.bf16 %v1192, %v1192
        %v1285 = vpack.c.bf16 %v1276, %v1276
        %v1286 = vpack.c.bf16 %v1207, %v1207
        %v1287 = vpack.c.bf16 %v1277, %v1277
        %v1288 = vpack.c.bf16 %v1222, %v1222
        %v1289 = vpack.c.bf16 %v1223, %v1223
        %v1290 = vpack.c.bf16 %v1227, %v1227
        %v1291 = vpack.c.bf16 %v1228, %v1228
        %v1292 = vpack.c.bf16 %v1278, %v1278
        %v1293 = vpack.c.bf16 %v1242, %v1242
        %v1294 = vpack.c.bf16 %v1279, %v1279
        %v1295 = vpack.c.bf16 %v1256, %v1256
        %v1296 = vpack.c.bf16 %v1280, %v1280
        %v1297 = vpack.c.bf16 %v1270, %v1270
        %v1298 = vpack.c.bf16 %v1271, %v1271
        %v1299 = vld [vmem:[#allocation2] sm:$0xf]
        %v1300 = vld [vmem:[#allocation2 + $0x4] sm:$0xf]
        %v1301 = vld [vmem:[#allocation2 + $0x8] sm:$0xf]
        %v1302 = vld [vmem:[#allocation2 + $0xc] sm:$0xf]
        %v1303 = vld [vmem:[#allocation2 + $0x10] sm:$0xf]
        %v1304 = vld [vmem:[#allocation2 + $0x14] sm:$0xf]
        %v1305 = vld [vmem:[#allocation2 + $0x18] sm:$0xf]
        %v1306 = vld [vmem:[#allocation2 + $0x1c] sm:$0xf]
        %v1307 = vld [vmem:[#allocation2 + $0x20] sm:$0xf]
        %v1308 = vld [vmem:[#allocation2 + $0x24] sm:$0xf]
        %v1309 = vld [vmem:[#allocation2 + $0x28] sm:$0xf]
        %v1310 = vld [vmem:[#allocation2 + $0x2c] sm:$0xf]
        %v1311 = vld [vmem:[#allocation2 + $0x30] sm:$0xf]
        %v1312 = vld [vmem:[#allocation2 + $0x34] sm:$0xf]
        %v1313 = vld [vmem:[#allocation2 + $0x38] sm:$0xf]
        %v1314 = vld [vmem:[#allocation2 + $0x3c] sm:$0xf]
        %v1315 = vld [vmem:[#allocation2 + $0x40] sm:$0xf]
        %v1316 = vld [vmem:[#allocation2 + $0x44] sm:$0xf]
        %v1317 = vld [vmem:[#allocation2 + $0x48] sm:$0xf]
        %v1318 = vld [vmem:[#allocation2 + $0x4c] sm:$0xf]
        %v1319 = vld [vmem:[#allocation2 + $0x50] sm:$0xf]
        %v1320 = vld [vmem:[#allocation2 + $0x54] sm:$0xf]
        %v1321 = vld [vmem:[#allocation2 + $0x58] sm:$0xf]
        %v1322 = vld [vmem:[#allocation2 + $0x5c] sm:$0xf]
        %v1323 = vld [vmem:[#allocation2 + $0x60] sm:$0xf]
        %v1324 = vld [vmem:[#allocation2 + $0x64] sm:$0xf]
        %v1325 = vld [vmem:[#allocation2 + $0x68] sm:$0xf]
        %v1326 = vld [vmem:[#allocation2 + $0x6c] sm:$0xf]
        %v1327 = vld [vmem:[#allocation2 + $0x70] sm:$0xf]
        %v1328 = vld [vmem:[#allocation2 + $0x74] sm:$0xf]
        %v1329 = vld [vmem:[#allocation2 + $0x78] sm:$0xf]
        %v1330 = vld [vmem:[#allocation2 + $0x7c] sm:$0xf]
        %v1331 = vld [vmem:[#allocation2 + $0x80] sm:$0xf]
        %v1332 = vld [vmem:[#allocation2 + $0x84] sm:$0xf]
        %v1333 = vld [vmem:[#allocation2 + $0x88] sm:$0xf]
        %v1334 = vld [vmem:[#allocation2 + $0x8c] sm:$0xf]
        %v1335 = vld [vmem:[#allocation2 + $0x90] sm:$0xf]
        %v1336 = vld [vmem:[#allocation2 + $0x94] sm:$0xf]
        %v1337 = vld [vmem:[#allocation2 + $0x98] sm:$0xf]
        %v1338 = vld [vmem:[#allocation2 + $0x9c] sm:$0xf]
        %v1339 = vld [vmem:[#allocation2 + $0xa0] sm:$0xf]
        %v1340 = vld [vmem:[#allocation2 + $0xa4] sm:$0xf]
        %v1341 = vld [vmem:[#allocation2 + $0xa8] sm:$0xf]
        %v1342 = vld [vmem:[#allocation2 + $0xac] sm:$0xf]
        %v1343 = vld [vmem:[#allocation2 + $0xb0] sm:$0xf]
        %v1344 = vld [vmem:[#allocation2 + $0xb4] sm:$0xf]
        %v1345 = vld [vmem:[#allocation2 + $0xb8] sm:$0xf]
        %v1346 = vld [vmem:[#allocation2 + $0xbc] sm:$0xf]
        %v1347 = vld [vmem:[#allocation2 + $0xc0] sm:$0xf]
        %v1348 = vld [vmem:[#allocation2 + $0xc4] sm:$0xf]
        %v1349 = vld [vmem:[#allocation2 + $0xc8] sm:$0xf]
        %v1350 = vld [vmem:[#allocation2 + $0xcc] sm:$0xf]
        %v1351 = vld [vmem:[#allocation2 + $0xd0] sm:$0xf]
        %v1352 = vld [vmem:[#allocation2 + $0xd4] sm:$0xf]
        %v1353 = vld [vmem:[#allocation2 + $0xd8] sm:$0xf]
        %v1354 = vld [vmem:[#allocation2 + $0xdc] sm:$0xf]
        %v1355 = vld [vmem:[#allocation2 + $0xe0] sm:$0xf]
        %v1356 = vld [vmem:[#allocation2 + $0xe4] sm:$0xf]
        %v1357 = vld [vmem:[#allocation2 + $0xe8] sm:$0xf]
        %v1358 = vld [vmem:[#allocation2 + $0xec] sm:$0xf]
        %v1359 = vld [vmem:[#allocation2 + $0xf0] sm:$0xf]
        %v1360 = vld [vmem:[#allocation2 + $0xf4] sm:$0xf]
        %v1361 = vld [vmem:[#allocation2 + $0xf8] sm:$0xf]
        %v1362 = vld [vmem:[#allocation2 + $0xfc] sm:$0xf]
        %v1363 = vld [vmem:[#allocation2 + $0x100] sm:$0xf]
        %v1364 = vld [vmem:[#allocation2 + $0x104] sm:$0xf]
        %v1365 = vld [vmem:[#allocation2 + $0x108] sm:$0xf]
        %v1366 = vld [vmem:[#allocation2 + $0x10c] sm:$0xf]
        %v1367 = vld [vmem:[#allocation2 + $0x110] sm:$0xf]
        %v1368 = vld [vmem:[#allocation2 + $0x114] sm:$0xf]
        %v1369 = vld [vmem:[#allocation2 + $0x118] sm:$0xf]
        %v1370 = vld [vmem:[#allocation2 + $0x11c] sm:$0xf]
        %v1371 = vld [vmem:[#allocation2 + $0x120] sm:$0xf]
        %v1372 = vld [vmem:[#allocation2 + $0x124] sm:$0xf]
        %v1373 = vld [vmem:[#allocation2 + $0x128] sm:$0xf]
        %v1374 = vld [vmem:[#allocation2 + $0x12c] sm:$0xf]
        %v1375 = vld [vmem:[#allocation2 + $0x130] sm:$0xf]
        %v1376 = vld [vmem:[#allocation2 + $0x134] sm:$0xf]
        %v1377 = vld [vmem:[#allocation2 + $0x138] sm:$0xf]
        %v1378 = vld [vmem:[#allocation2 + $0x13c] sm:$0xf]
        %v1379 = vld [vmem:[#allocation2 + $0x140] sm:$0xf]
        %v1380 = vld [vmem:[#allocation2 + $0x144] sm:$0xf]
        %v1381 = vld [vmem:[#allocation2 + $0x148] sm:$0xf]
        %v1382 = vld [vmem:[#allocation2 + $0x14c] sm:$0xf]
        %v1383 = vld [vmem:[#allocation2 + $0x150] sm:$0xf]
        %v1384 = vld [vmem:[#allocation2 + $0x154] sm:$0xf]
        %v1385 = vld [vmem:[#allocation2 + $0x158] sm:$0xf]
        %v1386 = vld [vmem:[#allocation2 + $0x15c] sm:$0xf]
        %v1387 = vld [vmem:[#allocation2 + $0x160] sm:$0xf]
        %v1388 = vld [vmem:[#allocation2 + $0x164] sm:$0xf]
        %v1389 = vld [vmem:[#allocation2 + $0x168] sm:$0xf]
        %v1390 = vld [vmem:[#allocation2 + $0x16c] sm:$0xf]
        %v1391 = vld [vmem:[#allocation2 + $0x170] sm:$0xf]
        %v1392 = vld [vmem:[#allocation2 + $0x174] sm:$0xf]
        %v1393 = vld [vmem:[#allocation2 + $0x178] sm:$0xf]
        %v1394 = vld [vmem:[#allocation2 + $0x17c] sm:$0xf]
        %v1395 = vld [vmem:[#allocation2 + $0x180] sm:$0xf]
        %v1396 = vld [vmem:[#allocation2 + $0x184] sm:$0xf]
        %v1397 = vld [vmem:[#allocation2 + $0x188] sm:$0xf]
        %v1398 = vld [vmem:[#allocation2 + $0x18c] sm:$0xf]
        %v1399 = vld [vmem:[#allocation2 + $0x190] sm:$0xf]
        %v1400 = vld [vmem:[#allocation2 + $0x194] sm:$0xf]
        %v1401 = vld [vmem:[#allocation2 + $0x198] sm:$0xf]
        %v1402 = vld [vmem:[#allocation2 + $0x19c] sm:$0xf]
        %v1403 = vld [vmem:[#allocation2 + $0x1a0] sm:$0xf]
        %v1404 = vld [vmem:[#allocation2 + $0x1a4] sm:$0xf]
        %v1405 = vld [vmem:[#allocation2 + $0x1a8] sm:$0xf]
        %v1406 = vld [vmem:[#allocation2 + $0x1ac] sm:$0xf]
        %v1407 = vld [vmem:[#allocation2 + $0x1b0] sm:$0xf]
        %v1408 = vld [vmem:[#allocation2 + $0x1b4] sm:$0xf]
        %v1409 = vld [vmem:[#allocation2 + $0x1b8] sm:$0xf]
        %v1410 = vld [vmem:[#allocation2 + $0x1bc] sm:$0xf]
        %v1411 = vld [vmem:[#allocation2 + $0x1c0] sm:$0xf]
        %v1412 = vld [vmem:[#allocation2 + $0x1c4] sm:$0xf]
        %v1413 = vld [vmem:[#allocation2 + $0x1c8] sm:$0xf]
        %v1414 = vld [vmem:[#allocation2 + $0x1cc] sm:$0xf]
        %v1415 = vld [vmem:[#allocation2 + $0x1d0] sm:$0xf]
        %v1416 = vld [vmem:[#allocation2 + $0x1d4] sm:$0xf]
        %v1417 = vld [vmem:[#allocation2 + $0x1d8] sm:$0xf]
        %v1418 = vld [vmem:[#allocation2 + $0x1dc] sm:$0xf]
        %v1419 = vld [vmem:[#allocation2 + $0x1e0] sm:$0xf]
        %v1420 = vld [vmem:[#allocation2 + $0x1e4] sm:$0xf]
        %v1421 = vld [vmem:[#allocation2 + $0x1e8] sm:$0xf]
        %v1422 = vld [vmem:[#allocation2 + $0x1ec] sm:$0xf]
        %v1423 = vld [vmem:[#allocation2 + $0x1f0] sm:$0xf]
        %v1424 = vld [vmem:[#allocation2 + $0x1f4] sm:$0xf]
        %v1425 = vld [vmem:[#allocation2 + $0x1f8] sm:$0xf]
        %v1426 = vld [vmem:[#allocation2 + $0x1fc] sm:$0xf]
        %v1427 = vld [vmem:[#allocation2 + $0x200] sm:$0xf]
        %v1428 = vld [vmem:[#allocation2 + $0x204] sm:$0xf]
        %v1429 = vld [vmem:[#allocation2 + $0x208] sm:$0xf]
        %v1430 = vld [vmem:[#allocation2 + $0x20c] sm:$0xf]
        %v1431 = vld [vmem:[#allocation2 + $0x210] sm:$0xf]
        %v1432 = vld [vmem:[#allocation2 + $0x214] sm:$0xf]
        %v1433 = vld [vmem:[#allocation2 + $0x218] sm:$0xf]
        %v1434 = vld [vmem:[#allocation2 + $0x21c] sm:$0xf]
        %v1435 = vld [vmem:[#allocation2 + $0x220] sm:$0xf]
        %v1436 = vld [vmem:[#allocation2 + $0x224] sm:$0xf]
        %v1437 = vld [vmem:[#allocation2 + $0x228] sm:$0xf]
        %v1438 = vld [vmem:[#allocation2 + $0x22c] sm:$0xf]
        %v1439 = vld [vmem:[#allocation2 + $0x230] sm:$0xf]
        %v1440 = vld [vmem:[#allocation2 + $0x234] sm:$0xf]
        %v1441 = vld [vmem:[#allocation2 + $0x238] sm:$0xf]
        %v1442 = vld [vmem:[#allocation2 + $0x23c] sm:$0xf]
        %v1443 = vld [vmem:[#allocation2 + $0x240] sm:$0xf]
        %v1444 = vld [vmem:[#allocation2 + $0x244] sm:$0xf]
        %v1445 = vld [vmem:[#allocation2 + $0x248] sm:$0xf]
        %v1446 = vld [vmem:[#allocation2 + $0x24c] sm:$0xf]
        %v1447 = vld [vmem:[#allocation2 + $0x250] sm:$0xf]
        %v1448 = vld [vmem:[#allocation2 + $0x254] sm:$0xf]
        %v1449 = vld [vmem:[#allocation2 + $0x258] sm:$0xf]
        %v1450 = vld [vmem:[#allocation2 + $0x25c] sm:$0xf]
        %v1451 = vld [vmem:[#allocation2 + $0x260] sm:$0xf]
        %v1452 = vld [vmem:[#allocation2 + $0x264] sm:$0xf]
        %v1453 = vld [vmem:[#allocation2 + $0x268] sm:$0xf]
        %v1454 = vld [vmem:[#allocation2 + $0x26c] sm:$0xf]
        %v1455 = vld [vmem:[#allocation2 + $0x270] sm:$0xf]
        %v1456 = vld [vmem:[#allocation2 + $0x274] sm:$0xf]
        %v1457 = vld [vmem:[#allocation2 + $0x278] sm:$0xf]
        %v1458 = vld [vmem:[#allocation2 + $0x27c] sm:$0xf]
        %v1459 = vld [vmem:[#allocation2 + $0x280] sm:$0xf]
        %v1460 = vld [vmem:[#allocation2 + $0x284] sm:$0xf]
        %v1461 = vld [vmem:[#allocation2 + $0x288] sm:$0xf]
        %v1462 = vld [vmem:[#allocation2 + $0x28c] sm:$0xf]
        %v1463 = vld [vmem:[#allocation2 + $0x290] sm:$0xf]
        %v1464 = vld [vmem:[#allocation2 + $0x294] sm:$0xf]
        %v1465 = vld [vmem:[#allocation2 + $0x298] sm:$0xf]
        %v1466 = vld [vmem:[#allocation2 + $0x29c] sm:$0xf]
        %v1467 = vld [vmem:[#allocation2 + $0x2a0] sm:$0xf]
        %v1468 = vld [vmem:[#allocation2 + $0x2a4] sm:$0xf]
        %v1469 = vld [vmem:[#allocation2 + $0x2a8] sm:$0xf]
        %v1470 = vld [vmem:[#allocation2 + $0x2ac] sm:$0xf]
        %v1471 = vld [vmem:[#allocation2 + $0x2b0] sm:$0xf]
        %v1472 = vld [vmem:[#allocation2 + $0x2b4] sm:$0xf]
        %v1473 = vld [vmem:[#allocation2 + $0x2b8] sm:$0xf]
        %v1474 = vld [vmem:[#allocation2 + $0x2bc] sm:$0xf]
        %v1475 = vld [vmem:[#allocation2 + $0x2c0] sm:$0xf]
        %v1476 = vld [vmem:[#allocation2 + $0x2c4] sm:$0xf]
        %v1477 = vld [vmem:[#allocation2 + $0x2c8] sm:$0xf]
        %v1478 = vld [vmem:[#allocation2 + $0x2cc] sm:$0xf]
        %v1479 = vld [vmem:[#allocation2 + $0x2d0] sm:$0xf]
        %v1480 = vld [vmem:[#allocation2 + $0x2d4] sm:$0xf]
        %v1481 = vld [vmem:[#allocation2 + $0x2d8] sm:$0xf]
        %v1482 = vld [vmem:[#allocation2 + $0x2dc] sm:$0xf]
        %v1483 = vld [vmem:[#allocation2 + $0x2e0] sm:$0xf]
        %v1484 = vld [vmem:[#allocation2 + $0x2e4] sm:$0xf]
        %v1485 = vld [vmem:[#allocation2 + $0x2e8] sm:$0xf]
        %v1486 = vld [vmem:[#allocation2 + $0x2ec] sm:$0xf]
        %v1487 = vld [vmem:[#allocation2 + $0x2f0] sm:$0xf]
        %v1488 = vld [vmem:[#allocation2 + $0x2f4] sm:$0xf]
        %v1489 = vld [vmem:[#allocation2 + $0x2f8] sm:$0xf]
        %v1490 = vld [vmem:[#allocation2 + $0x2fc] sm:$0xf]
        %v1491 = vld [vmem:[#allocation2 + $0x300] sm:$0xf]
        %v1492 = vld [vmem:[#allocation2 + $0x304] sm:$0xf]
        %v1493 = vld [vmem:[#allocation2 + $0x308] sm:$0xf]
        %v1494 = vld [vmem:[#allocation2 + $0x30c] sm:$0xf]
        %v1495 = vld [vmem:[#allocation2 + $0x310] sm:$0xf]
        %v1496 = vld [vmem:[#allocation2 + $0x314] sm:$0xf]
        %v1497 = vld [vmem:[#allocation2 + $0x318] sm:$0xf]
        %v1498 = vld [vmem:[#allocation2 + $0x31c] sm:$0xf]
        %v1499 = vld [vmem:[#allocation2 + $0x320] sm:$0xf]
        %v1500 = vld [vmem:[#allocation2 + $0x324] sm:$0xf]
        %v1501 = vld [vmem:[#allocation2 + $0x328] sm:$0xf]
        %v1502 = vld [vmem:[#allocation2 + $0x32c] sm:$0xf]
        %v1503 = vld [vmem:[#allocation2 + $0x330] sm:$0xf]
        %v1504 = vld [vmem:[#allocation2 + $0x334] sm:$0xf]
        %v1505 = vld [vmem:[#allocation2 + $0x338] sm:$0xf]
        %v1506 = vld [vmem:[#allocation2 + $0x33c] sm:$0xf]
        %v1507 = vld [vmem:[#allocation2 + $0x340] sm:$0xf]
        %v1508 = vld [vmem:[#allocation2 + $0x344] sm:$0xf]
        %v1509 = vld [vmem:[#allocation2 + $0x348] sm:$0xf]
        %v1510 = vld [vmem:[#allocation2 + $0x34c] sm:$0xf]
        %v1511 = vld [vmem:[#allocation2 + $0x350] sm:$0xf]
        %v1512 = vld [vmem:[#allocation2 + $0x354] sm:$0xf]
        %v1513 = vld [vmem:[#allocation2 + $0x358] sm:$0xf]
        %v1514 = vld [vmem:[#allocation2 + $0x35c] sm:$0xf]
        %v1515 = vld [vmem:[#allocation2 + $0x360] sm:$0xf]
        %v1516 = vld [vmem:[#allocation2 + $0x364] sm:$0xf]
        %v1517 = vld [vmem:[#allocation2 + $0x368] sm:$0xf]
        %v1518 = vld [vmem:[#allocation2 + $0x36c] sm:$0xf]
        %v1519 = vld [vmem:[#allocation2 + $0x370] sm:$0xf]
        %v1520 = vld [vmem:[#allocation2 + $0x374] sm:$0xf]
        %v1521 = vld [vmem:[#allocation2 + $0x378] sm:$0xf]
        %v1522 = vld [vmem:[#allocation2 + $0x37c] sm:$0xf]
        %v1523 = vld [vmem:[#allocation2 + $0x380] sm:$0xf]
        %v1524 = vld [vmem:[#allocation2 + $0x384] sm:$0xf]
        %v1525 = vld [vmem:[#allocation2 + $0x388] sm:$0xf]
        %v1526 = vld [vmem:[#allocation2 + $0x38c] sm:$0xf]
        %v1527 = vld [vmem:[#allocation2 + $0x390] sm:$0xf]
        %v1528 = vld [vmem:[#allocation2 + $0x394] sm:$0xf]
        %v1529 = vld [vmem:[#allocation2 + $0x398] sm:$0xf]
        %v1530 = vld [vmem:[#allocation2 + $0x39c] sm:$0xf]
        %v1531 = vld [vmem:[#allocation2 + $0x3a0] sm:$0xf]
        %v1532 = vld [vmem:[#allocation2 + $0x3a4] sm:$0xf]
        %v1533 = vld [vmem:[#allocation2 + $0x3a8] sm:$0xf]
        %v1534 = vld [vmem:[#allocation2 + $0x3ac] sm:$0xf]
        %v1535 = vld [vmem:[#allocation2 + $0x3b0] sm:$0xf]
        %v1536 = vld [vmem:[#allocation2 + $0x3b4] sm:$0xf]
        %v1537 = vld [vmem:[#allocation2 + $0x3b8] sm:$0xf]
        %v1538 = vld [vmem:[#allocation2 + $0x3bc] sm:$0xf]
        %v1539 = vld [vmem:[#allocation2 + $0x3c0] sm:$0xf]
        %v1540 = vld [vmem:[#allocation2 + $0x3c4] sm:$0xf]
        %v1541 = vld [vmem:[#allocation2 + $0x3c8] sm:$0xf]
        %v1542 = vld [vmem:[#allocation2 + $0x3cc] sm:$0xf]
        %v1543 = vld [vmem:[#allocation2 + $0x3d0] sm:$0xf]
        %v1544 = vld [vmem:[#allocation2 + $0x3d4] sm:$0xf]
        %v1545 = vld [vmem:[#allocation2 + $0x3d8] sm:$0xf]
        %v1546 = vld [vmem:[#allocation2 + $0x3dc] sm:$0xf]
        %v1547 = vld [vmem:[#allocation2 + $0x3e0] sm:$0xf]
        %v1548 = vld [vmem:[#allocation2 + $0x3e4] sm:$0xf]
        %v1549 = vld [vmem:[#allocation2 + $0x3e8] sm:$0xf]
        %v1550 = vld [vmem:[#allocation2 + $0x3ec] sm:$0xf]
        %v1551 = vld [vmem:[#allocation2 + $0x3f0] sm:$0xf]
        %v1552 = vld [vmem:[#allocation2 + $0x3f4] sm:$0xf]
        %v1553 = vld [vmem:[#allocation2 + $0x3f8] sm:$0xf]
        %v1554 = vld [vmem:[#allocation2 + $0x3fc] sm:$0xf]
        %v1555 = vld [vmem:[#allocation2 + $0x400] sm:$0xf]
        %v1556 = vld [vmem:[#allocation2 + $0x404] sm:$0xf]
        %v1557 = vld [vmem:[#allocation2 + $0x408] sm:$0xf]
        %v1558 = vld [vmem:[#allocation2 + $0x40c] sm:$0xf]
        %v1559 = vld [vmem:[#allocation2 + $0x410] sm:$0xf]
        %v1560 = vld [vmem:[#allocation2 + $0x414] sm:$0xf]
        %v1561 = vld [vmem:[#allocation2 + $0x418] sm:$0xf]
        %v1562 = vld [vmem:[#allocation2 + $0x41c] sm:$0xf]
        %v1563 = vld [vmem:[#allocation2 + $0x420] sm:$0xf]
        %v1564 = vld [vmem:[#allocation2 + $0x424] sm:$0xf]
        %v1565 = vld [vmem:[#allocation2 + $0x428] sm:$0xf]
        %v1566 = vld [vmem:[#allocation2 + $0x42c] sm:$0xf]
        %v1567 = vld [vmem:[#allocation2 + $0x430] sm:$0xf]
        %v1568 = vld [vmem:[#allocation2 + $0x434] sm:$0xf]
        %v1569 = vld [vmem:[#allocation2 + $0x438] sm:$0xf]
        %v1570 = vld [vmem:[#allocation2 + $0x43c] sm:$0xf]
        %v1571 = vld [vmem:[#allocation2 + $0x440] sm:$0xf]
        %v1572 = vld [vmem:[#allocation2 + $0x444] sm:$0xf]
        %v1573 = vld [vmem:[#allocation2 + $0x448] sm:$0xf]
        %v1574 = vld [vmem:[#allocation2 + $0x44c] sm:$0xf]
        %v1575 = vld [vmem:[#allocation2 + $0x450] sm:$0xf]
        %v1576 = vld [vmem:[#allocation2 + $0x454] sm:$0xf]
        %v1577 = vld [vmem:[#allocation2 + $0x458] sm:$0xf]
        %v1578 = vld [vmem:[#allocation2 + $0x45c] sm:$0xf]
        %v1579 = vld [vmem:[#allocation2 + $0x460] sm:$0xf]
        %v1580 = vld [vmem:[#allocation2 + $0x464] sm:$0xf]
        %v1581 = vld [vmem:[#allocation2 + $0x468] sm:$0xf]
        %v1582 = vld [vmem:[#allocation2 + $0x46c] sm:$0xf]
        %v1583 = vld [vmem:[#allocation2 + $0x470] sm:$0xf]
        %v1584 = vld [vmem:[#allocation2 + $0x474] sm:$0xf]
        %v1585 = vld [vmem:[#allocation2 + $0x478] sm:$0xf]
        %v1586 = vld [vmem:[#allocation2 + $0x47c] sm:$0xf]
        %v1587 = vld [vmem:[%s9] sm:$0x1]
        %v1876 = vunpack.c.l.b16 %v1299
        %v1877 = vunpack.c.l.b16 %v1300
        %v1878 = vunpack.c.l.b16 %v1301
        %v1879 = vunpack.c.l.b16 %v1302
        %v1880 = vunpack.c.l.b16 %v1303
        %v1881 = vunpack.c.l.b16 %v1304
        %v1882 = vunpack.c.l.b16 %v1305
        %v1883 = vunpack.c.l.b16 %v1306
        %v1884 = vunpack.c.l.b16 %v1307
        %v1885 = vunpack.c.l.b16 %v1308
        %v1886 = vunpack.c.l.b16 %v1309
        %v1887 = vunpack.c.l.b16 %v1310
        %v1888 = vunpack.c.l.b16 %v1311
        %v1889 = vunpack.c.l.b16 %v1312
        %v1890 = vunpack.c.l.b16 %v1313
        %v1891 = vunpack.c.l.b16 %v1314
        %v1892 = vunpack.c.l.b16 %v1315
        %v1893 = vunpack.c.l.b16 %v1316
        %v1894 = vunpack.c.l.b16 %v1317
        %v1895 = vunpack.c.l.b16 %v1318
        %v1896 = vunpack.c.l.b16 %v1319
        %v1897 = vunpack.c.l.b16 %v1320
        %v1898 = vunpack.c.l.b16 %v1321
        %v1899 = vunpack.c.l.b16 %v1322
        %v1900 = vunpack.c.l.b16 %v1323
        %v1901 = vunpack.c.l.b16 %v1324
        %v1902 = vunpack.c.l.b16 %v1325
        %v1903 = vunpack.c.l.b16 %v1326
        %v1904 = vunpack.c.l.b16 %v1327
        %v1905 = vunpack.c.l.b16 %v1328
        %v1906 = vunpack.c.l.b16 %v1329
        %v1907 = vunpack.c.l.b16 %v1330
        %v1908 = vunpack.c.l.b16 %v1331
        %v1909 = vunpack.c.l.b16 %v1332
        %v1910 = vunpack.c.l.b16 %v1333
        %v1911 = vunpack.c.l.b16 %v1334
        %v1912 = vunpack.c.l.b16 %v1335
        %v1913 = vunpack.c.l.b16 %v1336
        %v1914 = vunpack.c.l.b16 %v1337
        %v1915 = vunpack.c.l.b16 %v1338
        %v1916 = vunpack.c.l.b16 %v1339
        %v1917 = vunpack.c.l.b16 %v1340
        %v1918 = vunpack.c.l.b16 %v1341
        %v1919 = vunpack.c.l.b16 %v1342
        %v1920 = vunpack.c.l.b16 %v1343
        %v1921 = vunpack.c.l.b16 %v1344
        %v1922 = vunpack.c.l.b16 %v1345
        %v1923 = vunpack.c.l.b16 %v1346
        %v1924 = vunpack.c.l.b16 %v1347
        %v1925 = vunpack.c.l.b16 %v1348
        %v1926 = vunpack.c.l.b16 %v1349
        %v1927 = vunpack.c.l.b16 %v1350
        %v1928 = vunpack.c.l.b16 %v1351
        %v1929 = vunpack.c.l.b16 %v1352
        %v1930 = vunpack.c.l.b16 %v1353
        %v1931 = vunpack.c.l.b16 %v1354
        %v1932 = vunpack.c.l.b16 %v1355
        %v1933 = vunpack.c.l.b16 %v1356
        %v1934 = vunpack.c.l.b16 %v1357
        %v1935 = vunpack.c.l.b16 %v1358
        %v1936 = vunpack.c.l.b16 %v1359
        %v1937 = vunpack.c.l.b16 %v1360
        %v1938 = vunpack.c.l.b16 %v1361
        %v1939 = vunpack.c.l.b16 %v1362
        %v1940 = vunpack.c.l.b16 %v1363
        %v1941 = vunpack.c.l.b16 %v1364
        %v1942 = vunpack.c.l.b16 %v1365
        %v1943 = vunpack.c.l.b16 %v1366
        %v1944 = vunpack.c.l.b16 %v1367
        %v1945 = vunpack.c.l.b16 %v1368
        %v1946 = vunpack.c.l.b16 %v1369
        %v1947 = vunpack.c.l.b16 %v1370
        %v1948 = vunpack.c.l.b16 %v1371
        %v1949 = vunpack.c.l.b16 %v1372
        %v1950 = vunpack.c.l.b16 %v1373
        %v1951 = vunpack.c.l.b16 %v1374
        %v1952 = vunpack.c.l.b16 %v1375
        %v1953 = vunpack.c.l.b16 %v1376
        %v1954 = vunpack.c.l.b16 %v1377
        %v1955 = vunpack.c.l.b16 %v1378
        %v1956 = vunpack.c.l.b16 %v1379
        %v1957 = vunpack.c.l.b16 %v1380
        %v1958 = vunpack.c.l.b16 %v1381
        %v1959 = vunpack.c.l.b16 %v1382
        %v1960 = vunpack.c.l.b16 %v1383
        %v1961 = vunpack.c.l.b16 %v1384
        %v1962 = vunpack.c.l.b16 %v1385
        %v1963 = vunpack.c.l.b16 %v1386
        %v1964 = vunpack.c.l.b16 %v1387
        %v1965 = vunpack.c.l.b16 %v1388
        %v1966 = vunpack.c.l.b16 %v1389
        %v1967 = vunpack.c.l.b16 %v1390
        %v1968 = vunpack.c.l.b16 %v1391
        %v1969 = vunpack.c.l.b16 %v1392
        %v1970 = vunpack.c.l.b16 %v1393
        %v1971 = vunpack.c.l.b16 %v1394
        %v1972 = vunpack.c.l.b16 %v1395
        %v1973 = vunpack.c.l.b16 %v1396
        %v1974 = vunpack.c.l.b16 %v1397
        %v1975 = vunpack.c.l.b16 %v1398
        %v1976 = vunpack.c.l.b16 %v1399
        %v1977 = vunpack.c.l.b16 %v1400
        %v1978 = vunpack.c.l.b16 %v1401
        %v1979 = vunpack.c.l.b16 %v1402
        %v1980 = vunpack.c.l.b16 %v1403
        %v1981 = vunpack.c.l.b16 %v1404
        %v1982 = vunpack.c.l.b16 %v1405
        %v1983 = vunpack.c.l.b16 %v1406
        %v1984 = vunpack.c.l.b16 %v1407
        %v1985 = vunpack.c.l.b16 %v1408
        %v1986 = vunpack.c.l.b16 %v1409
        %v1987 = vunpack.c.l.b16 %v1410
        %v1988 = vunpack.c.l.b16 %v1411
        %v1989 = vunpack.c.l.b16 %v1412
        %v1990 = vunpack.c.l.b16 %v1413
        %v1991 = vunpack.c.l.b16 %v1414
        %v1992 = vunpack.c.l.b16 %v1415
        %v1993 = vunpack.c.l.b16 %v1416
        %v1994 = vunpack.c.l.b16 %v1417
        %v1995 = vunpack.c.l.b16 %v1418
        %v1996 = vunpack.c.l.b16 %v1419
        %v1997 = vunpack.c.l.b16 %v1420
        %v1998 = vunpack.c.l.b16 %v1421
        %v1999 = vunpack.c.l.b16 %v1422
        %v2000 = vunpack.c.l.b16 %v1423
        %v2001 = vunpack.c.l.b16 %v1424
        %v2002 = vunpack.c.l.b16 %v1425
        %v2003 = vunpack.c.l.b16 %v1426
        %v2004 = vunpack.c.l.b16 %v1427
        %v2005 = vunpack.c.l.b16 %v1428
        %v2006 = vunpack.c.l.b16 %v1429
        %v2007 = vunpack.c.l.b16 %v1430
        %v2008 = vunpack.c.l.b16 %v1431
        %v2009 = vunpack.c.l.b16 %v1432
        %v2010 = vunpack.c.l.b16 %v1433
        %v2011 = vunpack.c.l.b16 %v1434
        %v2012 = vunpack.c.l.b16 %v1435
        %v2013 = vunpack.c.l.b16 %v1436
        %v2014 = vunpack.c.l.b16 %v1437
        %v2015 = vunpack.c.l.b16 %v1438
        %v2016 = vunpack.c.l.b16 %v1439
        %v2017 = vunpack.c.l.b16 %v1440
        %v2018 = vunpack.c.l.b16 %v1441
        %v2019 = vunpack.c.l.b16 %v1442
        %v2020 = vunpack.c.l.b16 %v1443
        %v2021 = vunpack.c.l.b16 %v1444
        %v2022 = vunpack.c.l.b16 %v1445
        %v2023 = vunpack.c.l.b16 %v1446
        %v2024 = vunpack.c.l.b16 %v1447
        %v2025 = vunpack.c.l.b16 %v1448
        %v2026 = vunpack.c.l.b16 %v1449
        %v2027 = vunpack.c.l.b16 %v1450
        %v2028 = vunpack.c.l.b16 %v1451
        %v2029 = vunpack.c.l.b16 %v1452
        %v2030 = vunpack.c.l.b16 %v1453
        %v2031 = vunpack.c.l.b16 %v1454
        %v2032 = vunpack.c.l.b16 %v1455
        %v2033 = vunpack.c.l.b16 %v1456
        %v2034 = vunpack.c.l.b16 %v1457
        %v2035 = vunpack.c.l.b16 %v1458
        %v2036 = vunpack.c.l.b16 %v1459
        %v2037 = vunpack.c.l.b16 %v1460
        %v2038 = vunpack.c.l.b16 %v1461
        %v2039 = vunpack.c.l.b16 %v1462
        %v2040 = vunpack.c.l.b16 %v1463
        %v2041 = vunpack.c.l.b16 %v1464
        %v2042 = vunpack.c.l.b16 %v1465
        %v2043 = vunpack.c.l.b16 %v1466
        %v2044 = vunpack.c.l.b16 %v1467
        %v2045 = vunpack.c.l.b16 %v1468
        %v2046 = vunpack.c.l.b16 %v1469
        %v2047 = vunpack.c.l.b16 %v1470
        %v2048 = vunpack.c.l.b16 %v1471
        %v2049 = vunpack.c.l.b16 %v1472
        %v2050 = vunpack.c.l.b16 %v1473
        %v2051 = vunpack.c.l.b16 %v1474
        %v2052 = vunpack.c.l.b16 %v1475
        %v2053 = vunpack.c.l.b16 %v1476
        %v2054 = vunpack.c.l.b16 %v1477
        %v2055 = vunpack.c.l.b16 %v1478
        %v2056 = vunpack.c.l.b16 %v1479
        %v2057 = vunpack.c.l.b16 %v1480
        %v2058 = vunpack.c.l.b16 %v1481
        %v2059 = vunpack.c.l.b16 %v1482
        %v2060 = vunpack.c.l.b16 %v1483
        %v2061 = vunpack.c.l.b16 %v1484
        %v2062 = vunpack.c.l.b16 %v1485
        %v2063 = vunpack.c.l.b16 %v1486
        %v2064 = vunpack.c.l.b16 %v1487
        %v2065 = vunpack.c.l.b16 %v1488
        %v2066 = vunpack.c.l.b16 %v1489
        %v2067 = vunpack.c.l.b16 %v1490
        %v2068 = vunpack.c.l.b16 %v1491
        %v2069 = vunpack.c.l.b16 %v1492
        %v2070 = vunpack.c.l.b16 %v1493
        %v2071 = vunpack.c.l.b16 %v1494
        %v2072 = vunpack.c.l.b16 %v1495
        %v2073 = vunpack.c.l.b16 %v1496
        %v2074 = vunpack.c.l.b16 %v1497
        %v2075 = vunpack.c.l.b16 %v1498
        %v2076 = vunpack.c.l.b16 %v1499
        %v2077 = vunpack.c.l.b16 %v1500
        %v2078 = vunpack.c.l.b16 %v1501
        %v2079 = vunpack.c.l.b16 %v1502
        %v2080 = vunpack.c.l.b16 %v1503
        %v2081 = vunpack.c.l.b16 %v1504
        %v2082 = vunpack.c.l.b16 %v1505
        %v2083 = vunpack.c.l.b16 %v1506
        %v2084 = vunpack.c.l.b16 %v1507
        %v2085 = vunpack.c.l.b16 %v1508
        %v2086 = vunpack.c.l.b16 %v1509
        %v2087 = vunpack.c.l.b16 %v1510
        %v2088 = vunpack.c.l.b16 %v1511
        %v2089 = vunpack.c.l.b16 %v1512
        %v2090 = vunpack.c.l.b16 %v1513
        %v2091 = vunpack.c.l.b16 %v1514
        %v2092 = vunpack.c.l.b16 %v1515
        %v2093 = vunpack.c.l.b16 %v1516
        %v2094 = vunpack.c.l.b16 %v1517
        %v2095 = vunpack.c.l.b16 %v1518
        %v2096 = vunpack.c.l.b16 %v1519
        %v2097 = vunpack.c.l.b16 %v1520
        %v2098 = vunpack.c.l.b16 %v1521
        %v2099 = vunpack.c.l.b16 %v1522
        %v2100 = vunpack.c.l.b16 %v1523
        %v2101 = vunpack.c.l.b16 %v1524
        %v2102 = vunpack.c.l.b16 %v1525
        %v2103 = vunpack.c.l.b16 %v1526
        %v2104 = vunpack.c.l.b16 %v1527
        %v2105 = vunpack.c.l.b16 %v1528
        %v2106 = vunpack.c.l.b16 %v1529
        %v2107 = vunpack.c.l.b16 %v1530
        %v2108 = vunpack.c.l.b16 %v1531
        %v2109 = vunpack.c.l.b16 %v1532
        %v2110 = vunpack.c.l.b16 %v1533
        %v2111 = vunpack.c.l.b16 %v1534
        %v2112 = vunpack.c.l.b16 %v1535
        %v2113 = vunpack.c.l.b16 %v1536
        %v2114 = vunpack.c.l.b16 %v1537
        %v2115 = vunpack.c.l.b16 %v1538
        %v2116 = vunpack.c.l.b16 %v1539
        %v2117 = vunpack.c.l.b16 %v1540
        %v2118 = vunpack.c.l.b16 %v1541
        %v2119 = vunpack.c.l.b16 %v1542
        %v2120 = vunpack.c.l.b16 %v1543
        %v2121 = vunpack.c.l.b16 %v1544
        %v2122 = vunpack.c.l.b16 %v1545
        %v2123 = vunpack.c.l.b16 %v1546
        %v2124 = vunpack.c.l.b16 %v1547
        %v2125 = vunpack.c.l.b16 %v1548
        %v2126 = vunpack.c.l.b16 %v1549
        %v2127 = vunpack.c.l.b16 %v1550
        %v2128 = vunpack.c.l.b16 %v1551
        %v2129 = vunpack.c.l.b16 %v1552
        %v2130 = vunpack.c.l.b16 %v1553
        %v2131 = vunpack.c.l.b16 %v1554
        %v2132 = vunpack.c.l.b16 %v1555
        %v2133 = vunpack.c.l.b16 %v1556
        %v2134 = vunpack.c.l.b16 %v1557
        %v2135 = vunpack.c.l.b16 %v1558
        %v2136 = vunpack.c.l.b16 %v1559
        %v2137 = vunpack.c.l.b16 %v1560
        %v2138 = vunpack.c.l.b16 %v1561
        %v2139 = vunpack.c.l.b16 %v1562
        %v2140 = vunpack.c.l.b16 %v1563
        %v2141 = vunpack.c.l.b16 %v1564
        %v2142 = vunpack.c.l.b16 %v1565
        %v2143 = vunpack.c.l.b16 %v1566
        %v2144 = vunpack.c.l.b16 %v1567
        %v2145 = vunpack.c.l.b16 %v1568
        %v2146 = vunpack.c.l.b16 %v1569
        %v2147 = vunpack.c.l.b16 %v1570
        %v2148 = vunpack.c.l.b16 %v1571
        %v2149 = vunpack.c.l.b16 %v1572
        %v2150 = vunpack.c.l.b16 %v1573
        %v2151 = vunpack.c.l.b16 %v1574
        %v2152 = vunpack.c.l.b16 %v1575
        %v2153 = vunpack.c.l.b16 %v1576
        %v2154 = vunpack.c.l.b16 %v1577
        %v2155 = vunpack.c.l.b16 %v1578
        %v2156 = vunpack.c.l.b16 %v1579
        %v2157 = vunpack.c.l.b16 %v1580
        %v2158 = vunpack.c.l.b16 %v1581
        %v2159 = vunpack.c.l.b16 %v1582
        %v2160 = vunpack.c.l.b16 %v1583
        %v2161 = vunpack.c.l.b16 %v1584
        %v2162 = vunpack.c.l.b16 %v1585
        %v2163 = vunpack.c.l.b16 %v1586
        %v2164 = vpack.c.b16 %v1877, %v1876
        %v2165 = vpack.c.b16 %v1879, %v1878
        %v2166 = vpack.c.b16 %v1881, %v1880
        %v2167 = vpack.c.b16 %v1883, %v1882
        %v2168 = vpack.c.b16 %v1885, %v1884
        %v2169 = vpack.c.b16 %v1887, %v1886
        %v2170 = vpack.c.b16 %v1889, %v1888
        %v2171 = vpack.c.b16 %v1891, %v1890
        %v2172 = vpack.c.b16 %v1893, %v1892
        %v2173 = vpack.c.b16 %v1895, %v1894
        %v2174 = vpack.c.b16 %v1897, %v1896
        %v2175 = vpack.c.b16 %v1899, %v1898
        %v2176 = vpack.c.b16 %v1901, %v1900
        %v2177 = vpack.c.b16 %v1903, %v1902
        %v2178 = vpack.c.b16 %v1905, %v1904
        %v2179 = vpack.c.b16 %v1907, %v1906
        %v2180 = vpack.c.b16 %v1909, %v1908
        %v2181 = vpack.c.b16 %v1911, %v1910
        %v2182 = vpack.c.b16 %v1913, %v1912
        %v2183 = vpack.c.b16 %v1915, %v1914
        %v2184 = vpack.c.b16 %v1917, %v1916
        %v2185 = vpack.c.b16 %v1919, %v1918
        %v2186 = vpack.c.b16 %v1921, %v1920
        %v2187 = vpack.c.b16 %v1923, %v1922
        %v2188 = vpack.c.b16 %v1925, %v1924
        %v2189 = vpack.c.b16 %v1927, %v1926
        %v2190 = vpack.c.b16 %v1929, %v1928
        %v2191 = vpack.c.b16 %v1931, %v1930
        %v2192 = vpack.c.b16 %v1933, %v1932
        %v2193 = vpack.c.b16 %v1935, %v1934
        %v2194 = vpack.c.b16 %v1937, %v1936
        %v2195 = vpack.c.b16 %v1939, %v1938
        %v2196 = vpack.c.b16 %v1941, %v1940
        %v2197 = vpack.c.b16 %v1943, %v1942
        %v2198 = vpack.c.b16 %v1945, %v1944
        %v2199 = vpack.c.b16 %v1947, %v1946
        %v2200 = vpack.c.b16 %v1949, %v1948
        %v2201 = vpack.c.b16 %v1951, %v1950
        %v2202 = vpack.c.b16 %v1953, %v1952
        %v2203 = vpack.c.b16 %v1955, %v1954
        %v2204 = vpack.c.b16 %v1957, %v1956
        %v2205 = vpack.c.b16 %v1959, %v1958
        %v2206 = vpack.c.b16 %v1961, %v1960
        %v2207 = vpack.c.b16 %v1963, %v1962
        %v2208 = vpack.c.b16 %v1965, %v1964
        %v2209 = vpack.c.b16 %v1967, %v1966
        %v2210 = vpack.c.b16 %v1969, %v1968
        %v2211 = vpack.c.b16 %v1971, %v1970
        %v2212 = vpack.c.b16 %v1973, %v1972
        %v2213 = vpack.c.b16 %v1975, %v1974
        %v2214 = vpack.c.b16 %v1977, %v1976
        %v2215 = vpack.c.b16 %v1979, %v1978
        %v2216 = vpack.c.b16 %v1981, %v1980
        %v2217 = vpack.c.b16 %v1983, %v1982
        %v2218 = vpack.c.b16 %v1985, %v1984
        %v2219 = vpack.c.b16 %v1987, %v1986
        %v2220 = vpack.c.b16 %v1989, %v1988
        %v2221 = vpack.c.b16 %v1991, %v1990
        %v2222 = vpack.c.b16 %v1993, %v1992
        %v2223 = vpack.c.b16 %v1995, %v1994
        %v2224 = vpack.c.b16 %v1997, %v1996
        %v2225 = vpack.c.b16 %v1999, %v1998
        %v2226 = vpack.c.b16 %v2001, %v2000
        %v2227 = vpack.c.b16 %v2003, %v2002
        %v2228 = vpack.c.b16 %v2005, %v2004
        %v2229 = vpack.c.b16 %v2007, %v2006
        %v2230 = vpack.c.b16 %v2009, %v2008
        %v2231 = vpack.c.b16 %v2011, %v2010
        %v2232 = vpack.c.b16 %v2013, %v2012
        %v2233 = vpack.c.b16 %v2015, %v2014
        %v2234 = vpack.c.b16 %v2017, %v2016
        %v2235 = vpack.c.b16 %v2019, %v2018
        %v2236 = vpack.c.b16 %v2021, %v2020
        %v2237 = vpack.c.b16 %v2023, %v2022
        %v2238 = vpack.c.b16 %v2025, %v2024
        %v2239 = vpack.c.b16 %v2027, %v2026
        %v2240 = vpack.c.b16 %v2029, %v2028
        %v2241 = vpack.c.b16 %v2031, %v2030
        %v2242 = vpack.c.b16 %v2033, %v2032
        %v2243 = vpack.c.b16 %v2035, %v2034
        %v2244 = vpack.c.b16 %v2037, %v2036
        %v2245 = vpack.c.b16 %v2039, %v2038
        %v2246 = vpack.c.b16 %v2041, %v2040
        %v2247 = vpack.c.b16 %v2043, %v2042
        %v2248 = vpack.c.b16 %v2045, %v2044
        %v2249 = vpack.c.b16 %v2047, %v2046
        %v2250 = vpack.c.b16 %v2049, %v2048
        %v2251 = vpack.c.b16 %v2051, %v2050
        %v2252 = vpack.c.b16 %v2053, %v2052
        %v2253 = vpack.c.b16 %v2055, %v2054
        %v2254 = vpack.c.b16 %v2057, %v2056
        %v2255 = vpack.c.b16 %v2059, %v2058
        %v2256 = vpack.c.b16 %v2061, %v2060
        %v2257 = vpack.c.b16 %v2063, %v2062
        %v2258 = vpack.c.b16 %v2065, %v2064
        %v2259 = vpack.c.b16 %v2067, %v2066
        %v2260 = vpack.c.b16 %v2069, %v2068
        %v2261 = vpack.c.b16 %v2071, %v2070
        %v2262 = vpack.c.b16 %v2073, %v2072
        %v2263 = vpack.c.b16 %v2075, %v2074
        %v2264 = vpack.c.b16 %v2077, %v2076
        %v2265 = vpack.c.b16 %v2079, %v2078
        %v2266 = vpack.c.b16 %v2081, %v2080
        %v2267 = vpack.c.b16 %v2083, %v2082
        %v2268 = vpack.c.b16 %v2085, %v2084
        %v2269 = vpack.c.b16 %v2087, %v2086
        %v2270 = vpack.c.b16 %v2089, %v2088
        %v2271 = vpack.c.b16 %v2091, %v2090
        %v2272 = vpack.c.b16 %v2093, %v2092
        %v2273 = vpack.c.b16 %v2095, %v2094
        %v2274 = vpack.c.b16 %v2097, %v2096
        %v2275 = vpack.c.b16 %v2099, %v2098
        %v2276 = vpack.c.b16 %v2101, %v2100
        %v2277 = vpack.c.b16 %v2103, %v2102
        %v2278 = vpack.c.b16 %v2105, %v2104
        %v2279 = vpack.c.b16 %v2107, %v2106
        %v2280 = vpack.c.b16 %v2109, %v2108
        %v2281 = vpack.c.b16 %v2111, %v2110
        %v2282 = vpack.c.b16 %v2113, %v2112
        %v2283 = vpack.c.b16 %v2115, %v2114
        %v2284 = vpack.c.b16 %v2117, %v2116
        %v2285 = vpack.c.b16 %v2119, %v2118
        %v2286 = vpack.c.b16 %v2121, %v2120
        %v2287 = vpack.c.b16 %v2123, %v2122
        %v2288 = vpack.c.b16 %v2125, %v2124
        %v2289 = vpack.c.b16 %v2127, %v2126
        %v2290 = vpack.c.b16 %v2129, %v2128
        %v2291 = vpack.c.b16 %v2131, %v2130
        %v2292 = vpack.c.b16 %v2133, %v2132
        %v2293 = vpack.c.b16 %v2135, %v2134
        %v2294 = vpack.c.b16 %v2137, %v2136
        %v2295 = vpack.c.b16 %v2139, %v2138
        %v2296 = vpack.c.b16 %v2141, %v2140
        %v2297 = vpack.c.b16 %v2143, %v2142
        %v2298 = vpack.c.b16 %v2145, %v2144
        %v2299 = vpack.c.b16 %v2147, %v2146
        %v2300 = vpack.c.b16 %v2149, %v2148
        %v2301 = vpack.c.b16 %v2151, %v2150
        %v2302 = vpack.c.b16 %v2153, %v2152
        %v2303 = vpack.c.b16 %v2155, %v2154
        %v2304 = vpack.c.b16 %v2157, %v2156
        %v2305 = vpack.c.b16 %v2159, %v2158
        %v2306 = vpack.c.b16 %v2161, %v2160
        %v2307 = vpack.c.b16 %v2163, %v2162
        %2452 = vmatpush.bf16.msra.mxu0 %v2171
        %2453 = vmatpush.bf16.msra.mxu0 %v2170
        %2454 = vmatpush.bf16.msra.mxu0 %v2169
        %2455 = vmatpush.bf16.msra.mxu0 %v2168
        %2456 = vmatpush.bf16.msra.mxu0 %v2167
        %2457 = vmatpush.bf16.msra.mxu0 %v2166
        %2458 = vmatpush.bf16.msra.mxu0 %v2165
        %2459 = vmatpush.bf16.msra.mxu0 %v2164
        %2460 = vmatmul.bf16.gmra.mxu0 %v1281
        %v2461 = vpop.f32.mrf.mxu0
        %v2462 = vadd.f32 %v1587, %v2461
        %v2463 = vpop.f32.mrf.mxu0
        %2464 = vdwg.mxu0
        %2465 = vmatpush.bf16.msra.mxu0 %v2179
        %2466 = vmatpush.bf16.msra.mxu0 %v2178
        %2467 = vmatpush.bf16.msra.mxu0 %v2177
        %2468 = vmatpush.bf16.msra.mxu0 %v2176
        %2469 = vmatpush.bf16.msra.mxu0 %v2175
        %2470 = vmatpush.bf16.msra.mxu0 %v2174
        %2471 = vmatpush.bf16.msra.mxu0 %v2173
        %2472 = vmatpush.bf16.msra.mxu0 %v2172
        %2473 = vmatmul.bf16.gmra.mxu0 %v1282
        %v2474 = vpop.f32.mrf.mxu0
        %v2475 = vadd.f32 %v2462, %v2474
        %v2476 = vpop.f32.mrf.mxu0
        %2477 = vdwg.mxu0
        %2478 = vmatpush.bf16.msra.mxu0 %v2187
        %2479 = vmatpush.bf16.msra.mxu0 %v2186
        %2480 = vmatpush.bf16.msra.mxu0 %v2185
        %2481 = vmatpush.bf16.msra.mxu0 %v2184
        %2482 = vmatpush.bf16.msra.mxu0 %v2183
        %2483 = vmatpush.bf16.msra.mxu0 %v2182
        %2484 = vmatpush.bf16.msra.mxu0 %v2181
        %2485 = vmatpush.bf16.msra.mxu0 %v2180
        %2486 = vmatmul.bf16.gmra.mxu0 %v1283
        %v2487 = vpop.f32.mrf.mxu0
        %v2488 = vadd.f32 %v2475, %v2487
        %v2489 = vpop.f32.mrf.mxu0
        %2490 = vdwg.mxu0
        %2491 = vmatpush.bf16.msra.mxu0 %v2195
        %2492 = vmatpush.bf16.msra.mxu0 %v2194
        %2493 = vmatpush.bf16.msra.mxu0 %v2193
        %2494 = vmatpush.bf16.msra.mxu0 %v2192
        %2495 = vmatpush.bf16.msra.mxu0 %v2191
        %2496 = vmatpush.bf16.msra.mxu0 %v2190
        %2497 = vmatpush.bf16.msra.mxu0 %v2189
        %2498 = vmatpush.bf16.msra.mxu0 %v2188
        %2499 = vmatmul.bf16.gmra.mxu0 %v1284
        %v2500 = vpop.f32.mrf.mxu0
        %v2501 = vadd.f32 %v2488, %v2500
        %v2502 = vpop.f32.mrf.mxu0
        %2503 = vdwg.mxu0
        %2504 = vmatpush.bf16.msra.mxu0 %v2203
        %2505 = vmatpush.bf16.msra.mxu0 %v2202
        %2506 = vmatpush.bf16.msra.mxu0 %v2201
        %2507 = vmatpush.bf16.msra.mxu0 %v2200
        %2508 = vmatpush.bf16.msra.mxu0 %v2199
        %2509 = vmatpush.bf16.msra.mxu0 %v2198
        %2510 = vmatpush.bf16.msra.mxu0 %v2197
        %2511 = vmatpush.bf16.msra.mxu0 %v2196
        %2512 = vmatmul.bf16.gmra.mxu0 %v1285
        %v2513 = vpop.f32.mrf.mxu0
        %v2514 = vadd.f32 %v2501, %v2513
        %v2515 = vpop.f32.mrf.mxu0
        %2516 = vdwg.mxu0
        %2517 = vmatpush.bf16.msra.mxu0 %v2211
        %2518 = vmatpush.bf16.msra.mxu0 %v2210
        %2519 = vmatpush.bf16.msra.mxu0 %v2209
        %2520 = vmatpush.bf16.msra.mxu0 %v2208
        %2521 = vmatpush.bf16.msra.mxu0 %v2207
        %2522 = vmatpush.bf16.msra.mxu0 %v2206
        %2523 = vmatpush.bf16.msra.mxu0 %v2205
        %2524 = vmatpush.bf16.msra.mxu0 %v2204
        %2525 = vmatmul.bf16.gmra.mxu0 %v1286
        %v2526 = vpop.f32.mrf.mxu0
        %v2527 = vadd.f32 %v2514, %v2526
        %v2528 = vpop.f32.mrf.mxu0
        %2529 = vdwg.mxu0
        %2530 = vmatpush.bf16.msra.mxu0 %v2219
        %2531 = vmatpush.bf16.msra.mxu0 %v2218
        %2532 = vmatpush.bf16.msra.mxu0 %v2217
        %2533 = vmatpush.bf16.msra.mxu0 %v2216
        %2534 = vmatpush.bf16.msra.mxu0 %v2215
        %2535 = vmatpush.bf16.msra.mxu0 %v2214
        %2536 = vmatpush.bf16.msra.mxu0 %v2213
        %2537 = vmatpush.bf16.msra.mxu0 %v2212
        %2538 = vmatmul.bf16.gmra.mxu0 %v1287
        %v2539 = vpop.f32.mrf.mxu0
        %v2540 = vadd.f32 %v2527, %v2539
        %v2541 = vpop.f32.mrf.mxu0
        %2542 = vdwg.mxu0
        %2543 = vmatpush.bf16.msra.mxu0 %v2227
        %2544 = vmatpush.bf16.msra.mxu0 %v2226
        %2545 = vmatpush.bf16.msra.mxu0 %v2225
        %2546 = vmatpush.bf16.msra.mxu0 %v2224
        %2547 = vmatpush.bf16.msra.mxu0 %v2223
        %2548 = vmatpush.bf16.msra.mxu0 %v2222
        %2549 = vmatpush.bf16.msra.mxu0 %v2221
        %2550 = vmatpush.bf16.msra.mxu0 %v2220
        %2551 = vmatmul.bf16.gmra.mxu0 %v1288
        %v2552 = vpop.f32.mrf.mxu0
        %v2553 = vadd.f32 %v2540, %v2552
        %v2554 = vpop.f32.mrf.mxu0
        %2555 = vdwg.mxu0
        %2556 = vmatpush.bf16.msra.mxu0 %v2235
        %2557 = vmatpush.bf16.msra.mxu0 %v2234
        %2558 = vmatpush.bf16.msra.mxu0 %v2233
        %2559 = vmatpush.bf16.msra.mxu0 %v2232
        %2560 = vmatpush.bf16.msra.mxu0 %v2231
        %2561 = vmatpush.bf16.msra.mxu0 %v2230
        %2562 = vmatpush.bf16.msra.mxu0 %v2229
        %2563 = vmatpush.bf16.msra.mxu0 %v2228
        %2564 = vmatmul.bf16.gmra.mxu0 %v1289
        %v2565 = vpop.f32.mrf.mxu0
        %v2566 = vadd.f32 %v2553, %v2565
        %v2567 = vpop.f32.mrf.mxu0
        %2568 = vdwg.mxu0
        %2569 = vmatpush.bf16.msra.mxu0 %v2243
        %2570 = vmatpush.bf16.msra.mxu0 %v2242
        %2571 = vmatpush.bf16.msra.mxu0 %v2241
        %2572 = vmatpush.bf16.msra.mxu0 %v2240
        %2573 = vmatpush.bf16.msra.mxu0 %v2239
        %2574 = vmatpush.bf16.msra.mxu0 %v2238
        %2575 = vmatpush.bf16.msra.mxu0 %v2237
        %2576 = vmatpush.bf16.msra.mxu0 %v2236
        %2577 = vmatmul.bf16.gmra.mxu0 %v1290
        %v2578 = vpop.f32.mrf.mxu0
        %v2579 = vadd.f32 %v2566, %v2578
        %v2580 = vpop.f32.mrf.mxu0
        %2581 = vdwg.mxu0
        %2582 = vmatpush.bf16.msra.mxu0 %v2251
        %2583 = vmatpush.bf16.msra.mxu0 %v2250
        %2584 = vmatpush.bf16.msra.mxu0 %v2249
        %2585 = vmatpush.bf16.msra.mxu0 %v2248
        %2586 = vmatpush.bf16.msra.mxu0 %v2247
        %2587 = vmatpush.bf16.msra.mxu0 %v2246
        %2588 = vmatpush.bf16.msra.mxu0 %v2245
        %2589 = vmatpush.bf16.msra.mxu0 %v2244
        %2590 = vmatmul.bf16.gmra.mxu0 %v1291
        %v2591 = vpop.f32.mrf.mxu0
        %v2592 = vadd.f32 %v2579, %v2591
        %v2593 = vpop.f32.mrf.mxu0
        %2594 = vdwg.mxu0
        %2595 = vmatpush.bf16.msra.mxu0 %v2259
        %2596 = vmatpush.bf16.msra.mxu0 %v2258
        %2597 = vmatpush.bf16.msra.mxu0 %v2257
        %2598 = vmatpush.bf16.msra.mxu0 %v2256
        %2599 = vmatpush.bf16.msra.mxu0 %v2255
        %2600 = vmatpush.bf16.msra.mxu0 %v2254
        %2601 = vmatpush.bf16.msra.mxu0 %v2253
        %2602 = vmatpush.bf16.msra.mxu0 %v2252
        %2603 = vmatmul.bf16.gmra.mxu0 %v1292
        %v2604 = vpop.f32.mrf.mxu0
        %v2605 = vadd.f32 %v2592, %v2604
        %v2606 = vpop.f32.mrf.mxu0
        %2607 = vdwg.mxu0
        %2608 = vmatpush.bf16.msra.mxu0 %v2267
        %2609 = vmatpush.bf16.msra.mxu0 %v2266
        %2610 = vmatpush.bf16.msra.mxu0 %v2265
        %2611 = vmatpush.bf16.msra.mxu0 %v2264
        %2612 = vmatpush.bf16.msra.mxu0 %v2263
        %2613 = vmatpush.bf16.msra.mxu0 %v2262
        %2614 = vmatpush.bf16.msra.mxu0 %v2261
        %2615 = vmatpush.bf16.msra.mxu0 %v2260
        %2616 = vmatmul.bf16.gmra.mxu0 %v1293
        %v2617 = vpop.f32.mrf.mxu0
        %v2618 = vadd.f32 %v2605, %v2617
        %v2619 = vpop.f32.mrf.mxu0
        %2620 = vdwg.mxu0
        %2621 = vmatpush.bf16.msra.mxu0 %v2275
        %2622 = vmatpush.bf16.msra.mxu0 %v2274
        %2623 = vmatpush.bf16.msra.mxu0 %v2273
        %2624 = vmatpush.bf16.msra.mxu0 %v2272
        %2625 = vmatpush.bf16.msra.mxu0 %v2271
        %2626 = vmatpush.bf16.msra.mxu0 %v2270
        %2627 = vmatpush.bf16.msra.mxu0 %v2269
        %2628 = vmatpush.bf16.msra.mxu0 %v2268
        %2629 = vmatmul.bf16.gmra.mxu0 %v1294
        %v2630 = vpop.f32.mrf.mxu0
        %v2631 = vadd.f32 %v2618, %v2630
        %v2632 = vpop.f32.mrf.mxu0
        %2633 = vdwg.mxu0
        %2634 = vmatpush.bf16.msra.mxu0 %v2283
        %2635 = vmatpush.bf16.msra.mxu0 %v2282
        %2636 = vmatpush.bf16.msra.mxu0 %v2281
        %2637 = vmatpush.bf16.msra.mxu0 %v2280
        %2638 = vmatpush.bf16.msra.mxu0 %v2279
        %2639 = vmatpush.bf16.msra.mxu0 %v2278
        %2640 = vmatpush.bf16.msra.mxu0 %v2277
        %2641 = vmatpush.bf16.msra.mxu0 %v2276
        %2642 = vmatmul.bf16.gmra.mxu0 %v1295
        %v2643 = vpop.f32.mrf.mxu0
        %v2644 = vadd.f32 %v2631, %v2643
        %v2645 = vpop.f32.mrf.mxu0
        %2646 = vdwg.mxu0
        %2647 = vmatpush.bf16.msra.mxu0 %v2291
        %2648 = vmatpush.bf16.msra.mxu0 %v2290
        %2649 = vmatpush.bf16.msra.mxu0 %v2289
        %2650 = vmatpush.bf16.msra.mxu0 %v2288
        %2651 = vmatpush.bf16.msra.mxu0 %v2287
        %2652 = vmatpush.bf16.msra.mxu0 %v2286
        %2653 = vmatpush.bf16.msra.mxu0 %v2285
        %2654 = vmatpush.bf16.msra.mxu0 %v2284
        %2655 = vmatmul.bf16.gmra.mxu0 %v1296
        %v2656 = vpop.f32.mrf.mxu0
        %v2657 = vadd.f32 %v2644, %v2656
        %v2658 = vpop.f32.mrf.mxu0
        %2659 = vdwg.mxu0
        %2660 = vmatpush.bf16.msra.mxu0 %v2299
        %2661 = vmatpush.bf16.msra.mxu0 %v2298
        %2662 = vmatpush.bf16.msra.mxu0 %v2297
        %2663 = vmatpush.bf16.msra.mxu0 %v2296
        %2664 = vmatpush.bf16.msra.mxu0 %v2295
        %2665 = vmatpush.bf16.msra.mxu0 %v2294
        %2666 = vmatpush.bf16.msra.mxu0 %v2293
        %2667 = vmatpush.bf16.msra.mxu0 %v2292
        %2668 = vmatmul.bf16.gmra.mxu0 %v1297
        %v2669 = vpop.f32.mrf.mxu0
        %v2670 = vadd.f32 %v2657, %v2669
        %v2671 = vpop.f32.mrf.mxu0
        %2672 = vdwg.mxu0
        %2673 = vmatpush.bf16.msra.mxu0 %v2307
        %2674 = vmatpush.bf16.msra.mxu0 %v2306
        %2675 = vmatpush.bf16.msra.mxu0 %v2305
        %2676 = vmatpush.bf16.msra.mxu0 %v2304
        %2677 = vmatpush.bf16.msra.mxu0 %v2303
        %2678 = vmatpush.bf16.msra.mxu0 %v2302
        %2679 = vmatpush.bf16.msra.mxu0 %v2301
        %2680 = vmatpush.bf16.msra.mxu0 %v2300
        %2681 = vmatmul.bf16.gmra.mxu0 %v1298
        %v2682 = vpop.f32.mrf.mxu0
        %v2683 = vadd.f32 %v2670, %v2682
        %v2684 = vpop.f32.mrf.mxu0
        %2685 = vdwg.mxu0
        %v2686 = vmax.f32 %v2683, 0.0
        %v2687 = vld [vmem:[%s10] sm:$0x3]
        %v2688 = vld [vmem:[%s11] sm:$0xff]
        %v2689 = vld [vmem:[%s11 + $0x8] sm:$0xff]
        %v2690 = vld [vmem:[%s11 + $0x10] sm:$0xff]
        %v2691 = vld [vmem:[%s11 + $0x18] sm:$0xff]
        %v2692 = vld [vmem:[%s11 + $0x20] sm:$0xff]
        %v2693 = vld [vmem:[%s11 + $0x28] sm:$0xff]
        %v2694 = vld [vmem:[%s11 + $0x30] sm:$0xff]
        %v2695 = vld [vmem:[%s11 + $0x38] sm:$0xff]
        %v2696 = vld [vmem:[%s11 + $0x40] sm:$0xff]
        %v2697 = vld [vmem:[%s11 + $0x48] sm:$0xff]
        %v2698 = vld [vmem:[%s11 + $0x50] sm:$0xff]
        %v2699 = vld [vmem:[%s11 + $0x58] sm:$0xff]
        %v2700 = vld [vmem:[%s11 + $0x60] sm:$0xff]
        %v2701 = vld [vmem:[%s11 + $0x68] sm:$0xff]
        %v2702 = vld [vmem:[%s11 + $0x70] sm:$0xff]
        %v2703 = vld [vmem:[%s11 + $0x78] sm:$0xff]
        %2704 = vmatpush.msra.mxu0 %v2703
        %2705 = vmatpush.msra.mxu0 %v2702
        %2706 = vmatpush.msra.mxu0 %v2701
        %2707 = vmatpush.msra.mxu0 %v2700
        %2708 = vmatpush.msra.mxu0 %v2699
        %2709 = vmatpush.msra.mxu0 %v2698
        %2710 = vmatpush.msra.mxu0 %v2697
        %2711 = vmatpush.msra.mxu0 %v2696
        %2712 = vmatpush.msra.mxu0 %v2695
        %2713 = vmatpush.msra.mxu0 %v2694
        %2714 = vmatpush.msra.mxu0 %v2693
        %2715 = vmatpush.msra.mxu0 %v2692
        %2716 = vmatpush.msra.mxu0 %v2691
        %2717 = vmatpush.msra.mxu0 %v2690
        %2718 = vmatpush.msra.mxu0 %v2689
        %2719 = vmatpush.msra.mxu0 %v2688
        %2720 = vmatmul.f32.gmra.mxu0 %v2686
        %v2721 = vpop.f32.mrf.mxu0
        %v2722 = vadd.f32 0.0, %v2721
        %2723 = vdwg.mxu0
        %vm2724 = vcmask 15360
        %v2726 = vsel %vm2724, %v950, 0
        %v2729 = vsel %vm669, %v2687, 0
        %2731 = vmatpush.msra.mxu0 0.0
        %2732 = vmatpush.msra.mxu0 0.0
        %2733 = vmatpush.msra.mxu0 0.0
        %2734 = vmatpush.msra.mxu0 0.0
        %2735 = vmatpush.msra.mxu0 0.0
        %2736 = vmatpush.msra.mxu0 0.0
        %2737 = vmatpush.msra.mxu0 0.0
        %2738 = vmatpush.msra.mxu0 0.0
        %2739 = vmatpush.msra.mxu0 0.0
        %2740 = vmatpush.msra.mxu0 0.0
        %2741 = vmatpush.msra.mxu0 0.0
        %2742 = vmatpush.msra.mxu0 0.0
        %2743 = vmatpush.msra.mxu0 0.0
        %2744 = vmatpush.msra.mxu0 0.0
        %2745 = vmatpush.msra.mxu0 0.0
        %2746 = vmatpush.msra.mxu0 %v2729
        %2747 = vmatmul.f32.gmra.mxu0 %v2726
        %v2748 = vpop.f32.mrf.mxu0
        %v2749 = vadd.f32 %v2722, %v2748
        %2750 = vdwg.mxu0
        %v2751 = vld [vmem:[%s12] sm:$0x1]
        %v2752 = vadd.f32 %v2749, %v2751
        %vm2753 = vcmask 8192
        %2754 = vst.msk [vmem:[%s462] sm:$0x1] %vm2753, %v2752
        %s2755 = sand.u32 %s319, 1
        %s2756 = scalar_lea.sflag [#allocation4], %s2755
        %s2757 = sand.u32 %s319, 1
        %s2758 = scalar_lea.vmem [#allocation5], %s2757
        // Predicated region
        $region77: #{kissing_detector_forward.1} parent=71 // pred_check
          %p2759 = pneg %p329
        $region78: #{kissing_detector_forward.1} parent=71 // pred_check_branch
          %2761 = sbr.rel (%p2759) target = $region80
        $region79: #{kissing_detector_forward.1} parent=71 // pred_region
          %2763 = vsyncadd %s2756, 0
          %s2764 = scalar_lea.hbm %s13, %s28
          %s2766 = sshll.u32 %s2758, 4
          %s2767 = int_to_ptr.vmem [resolvable:$true] %s2766
          %s2768 = sshll.u32 %s2764, 4
          %s2769 = int_to_ptr.hbm [resolvable:$true] %s2768
          %2771 = dma.vmem_to_hbm [thread:$0]  %s2767, 16, %s2769, %s2756
        $region80: #{kissing_detector_forward.1} parent=71 // pred_fallthru
          _
      $region72: #{kissing_detector_forward.1} parent=5 // pred_fallthru
        _
      %p2772 = scmp.le.s32.totalorder 2, %s23
      // Predicated region
      $region81: #{kissing_detector_forward.1} parent=5 // pred_check
        %p2773 = pneg %p2772
      $region82: #{kissing_detector_forward.1} parent=5 // pred_check_branch
        %2775 = sbr.rel (%p2773) target = $region84
      $region83: #{kissing_detector_forward.1} parent=5 // pred_region
        %s2776 = ssub.s32 %s23, 2
        // Predicated region
        $region85: #{kissing_detector_forward.1} parent=83 // pred_check
          %p2777 = pneg %p335
        $region86: #{kissing_detector_forward.1} parent=83 // pred_check_branch
          %2779 = sbr.rel (%p2777) target = $region88
        $region87: #{kissing_detector_forward.1} parent=83 // pred_region
          %s2780 = sand.u32 %s320, 1
          %s2781 = scalar_lea.sflag [#allocation4], %s2780
          %s2782 = sand.u32 %s320, 1
          %s2783 = scalar_lea.vmem [#allocation5], %s2782
          %2785 = dma.done %s2781, 16
        $region88: #{kissing_detector_forward.1} parent=83 // pred_fallthru
          _
      $region84: #{kissing_detector_forward.1} parent=5 // pred_fallthru
        _
    $region6: #{kissing_detector_forward.1} parent=1 // loop_footer
      %s27 = sadd.s32 1, %s23
    $region7: #{kissing_detector_forward.1} parent=1 // loop_footer_branch
      %22 = sbr.rel target = $region3
    $region8: #{kissing_detector_forward.1} parent=1 // loop_exit
      _
    %2786 = vsyncpa [#allocation3], 1
    %s2787 = scalar_lea.sflag [#allocation3], 1
    %2788 = vsyncpa %s2787, 1
    %2789 = vsyncpa [#allocation4], 1
    %s2790 = scalar_lea.sflag [#allocation4], 1
    %2791 = vsyncpa %s2790, 1

</llo_original>
